<compile_context>
chip_gen: v5e
topology: v5e:2x2
jax: 0.10.0
libtpu: 0.0.40
codegen_flags: <defaults>
</compile_context>

<pallas_src>
import functools
from dataclasses import dataclass

import numpy as np
import jax
import jax.numpy as jnp
from jax import lax
from jax.experimental import pallas as pl
from jax.experimental.pallas import tpu as pltpu

_VMEM_LIMIT = 32 * 1024 * 1024  # safe on v5e/v6e/v7x; total footprint here is <1 MiB


# ----------------------------------------------------------------------------
# Static geometry of one conv stage (layouts are per-batch images concatenated
# along W; stride>1 inputs are space-to-depth "phase" decomposed).
# ----------------------------------------------------------------------------
@dataclass(frozen=True)
class _ConvGeom:
    cin: int; k: int; s: int; pad: int
    Ho: int; Wo: int                  # output grid (per image)
    Hq: int; Wq: int; Wtot: int       # phase-flat input grid (Wtot = N*Wq)
    Hp: int; Wp: int                  # padded per-image size (s*Hq, s*Wq)
    Lflat: int                        # Hq*Wtot   (flat input length)
    Lwin: int                         # window-layout output length
    taps: tuple                       # ((phase, lane_offset), ...) t = dy*k+dx
    res_off: int                      # pad*Wtot + pad (residual window offset)


def _conv_geom(H, W, C, N, k, s, pad):
    Ho = (H + 2 * pad - k) // s + 1
    Wo = (W + 2 * pad - k) // s + 1
    Hq = -(-(H + 2 * pad) // s)
    Wq = max(-(-(W + 2 * pad) // s), Wo + (k - 1) // s)   # keep windows inside image
    Wtot = N * Wq
    Lflat = Hq * Wtot
    Lwin = (Ho - 1) * Wtot + (N - 1) * Wq + Wo
    taps = tuple(((dy % s) * s + (dx % s), (dy // s) * Wtot + (dx // s))
                 for dy in range(k) for dx in range(k))
    return _ConvGeom(C, k, s, pad, Ho, Wo, Hq, Wq, Wtot, s * Hq, s * Wq,
                     Lflat, Lwin, taps, pad * Wtot + pad)


# ----------------------------------------------------------------------------
# Host-built exact 0/1 selection matrices (re-layout as one matmul in-kernel).
# ----------------------------------------------------------------------------
def _sel_np(prev: _ConvGeom, nxt: _ConvGeom, N: int) -> np.ndarray:
    """(s*s, prev.Lwin, nxt.Lflat): window-layout output of `prev` ->
    phase-flat, zero-padded input of `nxt` (one matrix per phase of `nxt`)."""
    s = nxt.s
    mats = np.zeros((s * s, prev.Lwin, nxt.Lflat), np.float32)
    for py in range(s):
        for px in range(s):
            p = py * s + px
            for r in range(nxt.Hq):
                for n in range(N):
                    for c in range(nxt.Wq):
                        y = s * r + py - nxt.pad
                        x = s * c + px - nxt.pad
                        if 0 <= y < prev.Ho and 0 <= x < prev.Wo:
                            mats[p, y * prev.Wtot + n * prev.Wq + x,
                                 r * nxt.Wtot + n * nxt.Wq + c] = 1.0
    return mats


def _sel_out_np(prev: _ConvGeom, N: int, lanes: int) -> np.ndarray:
    """(prev.Lwin, lanes): window layout -> dense columns n*Ho*Wo + y*Wo + x."""
    mat = np.zeros((prev.Lwin, lanes), np.float32)
    for y in range(prev.Ho):
        for n in range(N):
            for x in range(prev.Wo):
                mat[y * prev.Wtot + n * prev.Wq + x,
                    n * prev.Ho * prev.Wo + y * prev.Wo + x] = 1.0
    return mat


# ----------------------------------------------------------------------------
# One-time host prep of the raw input: pad + space-to-depth + batch-into-lanes.
# ----------------------------------------------------------------------------
def _prep_input(x, g: _ConvGeom, cin_pad: int):
    N, C, H, W = x.shape
    s = g.s
    xp = jnp.pad(x.astype(jnp.float32),
                 ((0, 0), (0, cin_pad - C),
                  (g.pad, g.Hp - H - g.pad), (g.pad, g.Wp - W - g.pad)))
    xp = xp.reshape(N, cin_pad, g.Hq, s, g.Wq, s)
    xp = xp.transpose(3, 5, 1, 2, 0, 4)            # (sy, sx, C, Hq, N, Wq)
    return xp.reshape(s * s * cin_pad, g.Hq * g.Wtot)


# ----------------------------------------------------------------------------
# Fused kernel
# ----------------------------------------------------------------------------
def _make_kernel(g1: _ConvGeom, g2: _ConvGeom, g3: _ConvGeom, num_stacks: int):
    f32 = jnp.float32

    def kernel(*refs):
        it = iter(refs)
        x0_ref = next(it)
        convs = [(next(it), next(it)) for _ in range(3)]            # (Wmat, b) x3
        res = [tuple(next(it) for _ in range(4)) for _ in range(num_stacks)]
        s12_ref, s23_ref, s33_ref, sout_ref = (next(it) for _ in range(4))
        o_ref = next(it)
        a1, a2, a3 = next(it), next(it), next(it)                   # VMEM scratch

        def conv(a_ref, w_ref, b_ref):                              # one MXU matmul
            return jnp.dot(w_ref[...], a_ref[...],
                           preferred_element_type=f32) + b_ref[...]

        # ---- conv2d_1 (k x k, stride s) + relu_1 ----------------------------
        for t, (ph, off) in enumerate(g1.taps):
            a1[pl.ds(t * g1.cin, g1.cin), :] = \
                x0_ref[pl.ds(ph * g1.cin, g1.cin), pl.ds(off, g1.Lwin)]
        y1 = jnp.maximum(conv(a1, *convs[0]), 0.0)                  # (C1, Lwin1)

        # ---- re-layout to conv2's phase-flat, zero-padded input -------------
        x2 = [jnp.dot(y1, s12_ref[p], preferred_element_type=f32)
              for p in range(g2.s * g2.s)]                          # (C1, Lflat2) each

        # ---- conv2d_2 + relu_2 ----------------------------------------------
        for t, (ph, off) in enumerate(g2.taps):
            a2[pl.ds(t * g2.cin, g2.cin), :] = x2[ph][:, off:off + g2.Lwin]
        y2 = jnp.maximum(conv(a2, *convs[1]), 0.0)                  # (C2, Lwin2)

        # ---- conv2d_3 (3x3, stride 1, no activation) -------------------------
        x3 = jnp.dot(y2, s23_ref[...], preferred_element_type=f32)  # (C2, Lflat3)
        for t, (_ph, off) in enumerate(g3.taps):
            a3[pl.ds(t * g3.cin, g3.cin), :] = x3[:, off:off + g3.Lwin]
        cur = conv(a3, *convs[2])                                   # (C2, Lwin3)

        # ---- residual stacks --------------------------------------------------
        for s_idx in range(num_stacks):
            rw1, rb1, rw2, rb2 = res[s_idx]
            x_flat = jnp.dot(cur, s33_ref[...], preferred_element_type=f32)
            xr = jnp.maximum(x_flat, 0.0)                           # relu_1 (pad stays 0)
            for t, (_ph, off) in enumerate(g3.taps):
                a3[pl.ds(t * g3.cin, g3.cin), :] = xr[:, off:off + g3.Lwin]
            h = jnp.maximum(conv(a3, rw1, rb1), 0.0)                # relu_2, (R, Lwin3)
            yc = jnp.dot(rw2[...], h, preferred_element_type=f32) + rb2[...]
            cur = x_flat[:, g3.res_off:g3.res_off + g3.Lwin] + yc   # residual add

        # ---- relu_3 + dense, lane-padded output store ------------------------
        out_win = jnp.maximum(cur, 0.0)
        o_ref[...] = jnp.dot(out_win, sout_ref[...], preferred_element_type=f32)

    return kernel


# ----------------------------------------------------------------------------
# Wrapper: builds layouts/constants, calls the single pallas_call, un-flattens.
# ----------------------------------------------------------------------------
def encoder_block_forward(x, params, *, kernel_size, stride, num_stacks):
    N, Cin, H, W = x.shape
    C1 = params["w1"].shape[0]            # hidden // 2
    C2 = params["w2"].shape[0]            # hidden
    k, s = kernel_size, stride
    pad = k // s - 1
    cin_pad = -(-Cin // 8) * 8            # keep per-tap channel blocks 8-aligned

    g1 = _conv_geom(H, W, cin_pad, N, k, s, pad)
    g2 = _conv_geom(g1.Ho, g1.Wo, C1, N, k, s, pad)
    g3 = _conv_geom(g2.Ho, g2.Wo, C2, N, 3, 1, 1)

    # trace-time constants (selection / re-layout matrices)
    s12 = jnp.asarray(_sel_np(g1, g2, N))
    s23 = jnp.asarray(_sel_np(g2, g3, N)[0])
    s33 = jnp.asarray(_sel_np(g3, g3, N)[0])
    n_out = N * g3.Ho * g3.Wo
    lanes_out = max(128, -(-n_out // 128) * 128)
    sout = jnp.asarray(_sel_out_np(g3, N, lanes_out))

    def wmat(w):                          # (O,I,kh,kw) -> (O, kh*kw*I)
        O, I, kh, kw = w.shape
        return w.transpose(0, 2, 3, 1).reshape(O, kh * kw * I).astype(jnp.float32)

    def bcol(b):
        return b.reshape(-1, 1).astype(jnp.float32)

    w1p = jnp.pad(params["w1"], ((0, 0), (0, cin_pad - Cin), (0, 0), (0, 0)))
    x0 = _prep_input(x, g1, cin_pad)

    operands = [x0,
                wmat(w1p), bcol(params["b1"]),
                wmat(params["w2"]), bcol(params["b2"]),
                wmat(params["w3"]), bcol(params["b3"])]
    for i in range(num_stacks):
        operands += [wmat(params[f"res{i}_w1"]), bcol(params[f"res{i}_b1"]),
                     wmat(params[f"res{i}_w2"]), bcol(params[f"res{i}_b2"])]
    operands += [s12, s23, s33, sout]

    def full_spec(arr):
        nd = arr.ndim
        return pl.BlockSpec(tuple(arr.shape), lambda i, _nd=nd: (0,) * _nd)

    out2d = pl.pallas_call(
        _make_kernel(g1, g2, g3, num_stacks),
        out_shape=jax.ShapeDtypeStruct((C2, lanes_out), jnp.float32),
        grid=(1,),
        in_specs=[full_spec(a) for a in operands],
        out_specs=pl.BlockSpec((C2, lanes_out), lambda i: (0, 0)),
        scratch_shapes=[
            pltpu.VMEM((k * k * cin_pad, g1.Lwin), jnp.float32),
            pltpu.VMEM((k * k * C1, g2.Lwin), jnp.float32),
            pltpu.VMEM((9 * C2, g3.Lwin), jnp.float32),
        ],
        compiler_params=pltpu.CompilerParams(
            dimension_semantics=("arbitrary",), vmem_limit_bytes=_VMEM_LIMIT),
    )(*operands)

    out = out2d[:, :n_out].reshape(C2, N, g3.Ho, g3.Wo).transpose(1, 0, 2, 3)
    return out


# ----------------------------------------------------------------------------
# Pure-JAX f32 reference (module semantics)
# ----------------------------------------------------------------------------
def encoder_block_ref(x, params, *, kernel_size, stride, num_stacks):
    def conv(a, w, b, s, p):
        y = lax.conv_general_dilated(
            a, w, (s, s), [(p, p), (p, p)],
            dimension_numbers=("NCHW", "OIHW", "NCHW"),
            precision=lax.Precision.HIGHEST)
        return y + b.reshape(1, -1, 1, 1)

    pad = kernel_size // stride - 1
    x = jax.nn.relu(conv(x, params["w1"], params["b1"], stride, pad))
    x = jax.nn.relu(conv(x, params["w2"], params["b2"], stride, pad))
    x = conv(x, params["w3"], params["b3"], 1, 1)
    for i in range(num_stacks):
        h = jax.nn.relu(conv(jax.nn.relu(x), params[f"res{i}_w1"],
                             params[f"res{i}_b1"], 1, 1))
        x = x + conv(h, params[f"res{i}_w2"], params[f"res{i}_b2"], 1, 0)
    return jax.nn.relu(x)


def init_params(key, in_channels, hidden_channels, res_channels, kernel_size,
                num_stacks):
    h2 = hidden_channels // 2
    keys = iter(jax.random.split(key, 32))
    scale = 0.1

    def w(shape):
        return (scale * jax.random.normal(next(keys), shape)).astype(jnp.float32)

    params = {
        "w1": w((h2, in_channels, kernel_size, kernel_size)), "b1": w((h2,)),
        "w2": w((hidden_channels, h2, kernel_size, kernel_size)), "b2": w((hidden_channels,)),
        "w3": w((hidden_channels, hidden_channels, 3, 3)), "b3": w((hidden_channels,)),
    }
    for s in range(num_stacks):
        params[f"res{s}_w1"] = w((res_channels, hidden_channels, 3, 3))
        params[f"res{s}_b1"] = w((res_channels,))
        params[f"res{s}_w2"] = w((hidden_channels, res_channels, 1, 1))
        params[f"res{s}_b2"] = w((hidden_channels,))
    return params


if __name__ == "__main__":
    # DCASE VQ-VAE encoder usage: kernel_size=4, stride=2 -> padding 1, each
    # strided conv halves H, W.
    batch, in_channels, spatial = 2, 4, 16
    hidden_channels, res_channels = 16, 8
    kernel_size, stride, num_stacks = 4, 2, 2

    key = jax.random.PRNGKey(0)
    kx, kp = jax.random.split(key)
    x = jax.random.normal(kx, (batch, in_channels, spatial, spatial),
                          dtype=jnp.float32)
    params = init_params(kp, in_channels, hidden_channels, res_channels,
                         kernel_size, num_stacks)

    fwd = jax.jit(functools.partial(encoder_block_forward,
                                    kernel_size=kernel_size, stride=stride,
                                    num_stacks=num_stacks))
    out = jax.block_until_ready(fwd(x, params))
    assert out.shape == (batch, hidden_channels, spatial // 4, spatial // 4), out.shape

    ref = encoder_block_ref(x, params, kernel_size=kernel_size, stride=stride,
                            num_stacks=num_stacks)
    max_err = float(jnp.max(jnp.abs(out - ref)))
    assert jnp.allclose(out, ref, atol=3e-2, rtol=3e-2), max_err

    print("KERNEL_OK")
</pallas_src>

<mosaic_0001>
module attributes {stable_mosaic.version = 11 : i64} {
  func.func @kernel(%arg0: i32, %arg1: memref<32x162xf32, #tpu.memory_space<vmem>>, %arg2: memref<8x128xf32, #tpu.memory_space<vmem>>, %arg3: memref<8x1xf32, #tpu.memory_space<vmem>>, %arg4: memref<16x128xf32, #tpu.memory_space<vmem>>, %arg5: memref<16x1xf32, #tpu.memory_space<vmem>>, %arg6: memref<16x144xf32, #tpu.memory_space<vmem>>, %arg7: memref<16x1xf32, #tpu.memory_space<vmem>>, %arg8: memref<8x144xf32, #tpu.memory_space<vmem>>, %arg9: memref<8x1xf32, #tpu.memory_space<vmem>>, %arg10: memref<16x8xf32, #tpu.memory_space<vmem>>, %arg11: memref<16x1xf32, #tpu.memory_space<vmem>>, %arg12: memref<8x144xf32, #tpu.memory_space<vmem>>, %arg13: memref<8x1xf32, #tpu.memory_space<vmem>>, %arg14: memref<16x8xf32, #tpu.memory_space<vmem>>, %arg15: memref<16x1xf32, #tpu.memory_space<vmem>>, %arg16: memref<4x143x50xf32, #tpu.memory_space<vmem>>, %arg17: memref<39x72xf32, #tpu.memory_space<vmem>>, %arg18: memref<46x72xf32, #tpu.memory_space<vmem>>, %arg19: memref<46x128xf32, #tpu.memory_space<vmem>>, %arg20: memref<16x128xf32, #tpu.memory_space<vmem>>, %arg21: memref<128x143xf32, #tpu.memory_space<vmem>>, %arg22: memref<128x39xf32, #tpu.memory_space<vmem>>, %arg23: memref<144x46xf32, #tpu.memory_space<vmem>>) attributes {dimension_semantics = [#tpu.dimension_semantics<arbitrary>], iteration_bounds = array<i64: 1>, scalar_prefetch = 0 : i64, scratch_operands = 3 : i64, tpu.core_type = #tpu.core_type<tc>, window_params = [{pipeline_mode = #tpu.pipeline_mode<synchronous>, transform_indices = @transform_0, window_bounds = array<i64: 32, 162>}, {pipeline_mode = #tpu.pipeline_mode<synchronous>, transform_indices = @transform_1, window_bounds = array<i64: 8, 128>}, {pipeline_mode = #tpu.pipeline_mode<synchronous>, transform_indices = @transform_2, window_bounds = array<i64: 8, 1>}, {pipeline_mode = #tpu.pipeline_mode<synchronous>, transform_indices = @transform_3, window_bounds = array<i64: 16, 128>}, {pipeline_mode = #tpu.pipeline_mode<synchronous>, transform_indices = @transform_4, window_bounds = array<i64: 16, 1>}, {pipeline_mode = #tpu.pipeline_mode<synchronous>, transform_indices = @transform_5, window_bounds = array<i64: 16, 144>}, {pipeline_mode = #tpu.pipeline_mode<synchronous>, transform_indices = @transform_6, window_bounds = array<i64: 16, 1>}, {pipeline_mode = #tpu.pipeline_mode<synchronous>, transform_indices = @transform_7, window_bounds = array<i64: 8, 144>}, {pipeline_mode = #tpu.pipeline_mode<synchronous>, transform_indices = @transform_8, window_bounds = array<i64: 8, 1>}, {pipeline_mode = #tpu.pipeline_mode<synchronous>, transform_indices = @transform_9, window_bounds = array<i64: 16, 8>}, {pipeline_mode = #tpu.pipeline_mode<synchronous>, transform_indices = @transform_10, window_bounds = array<i64: 16, 1>}, {pipeline_mode = #tpu.pipeline_mode<synchronous>, transform_indices = @transform_11, window_bounds = array<i64: 8, 144>}, {pipeline_mode = #tpu.pipeline_mode<synchronous>, transform_indices = @transform_12, window_bounds = array<i64: 8, 1>}, {pipeline_mode = #tpu.pipeline_mode<synchronous>, transform_indices = @transform_13, window_bounds = array<i64: 16, 8>}, {pipeline_mode = #tpu.pipeline_mode<synchronous>, transform_indices = @transform_14, window_bounds = array<i64: 16, 1>}, {pipeline_mode = #tpu.pipeline_mode<synchronous>, transform_indices = @transform_15, window_bounds = array<i64: 4, 143, 50>}, {pipeline_mode = #tpu.pipeline_mode<synchronous>, transform_indices = @transform_16, window_bounds = array<i64: 39, 72>}, {pipeline_mode = #tpu.pipeline_mode<synchronous>, transform_indices = @transform_17, window_bounds = array<i64: 46, 72>}, {pipeline_mode = #tpu.pipeline_mode<synchronous>, transform_indices = @transform_18, window_bounds = array<i64: 46, 128>}, {pipeline_mode = #tpu.pipeline_mode<synchronous>, transform_indices = @transform_19, window_bounds = array<i64: 16, 128>}]} {
    %c0 = arith.constant 0 : index
    %c0_0 = arith.constant 0 : index
    %0 = vector.load %arg1[%c0, %c0_0] : memref<32x162xf32, #tpu.memory_space<vmem>>, vector<8x143xf32>
    %c0_1 = arith.constant 0 : index
    %c0_2 = arith.constant 0 : index
    %1 = vector.load %arg21[%c0_1, %c0_2] : memref<128x143xf32, #tpu.memory_space<vmem>>, vector<8x143xf32>
    tpu.vector_store %arg21[%c0_1, %c0_2], %0 {strides = array<i32>} : memref<128x143xf32, #tpu.memory_space<vmem>>, vector<8x143xf32>,
    %c8 = arith.constant 8 : index
    %c0_3 = arith.constant 0 : index
    %2 = vector.load %arg1[%c8, %c0_3] : memref<32x162xf32, #tpu.memory_space<vmem>>, vector<8x143xf32>
    %c8_4 = arith.constant 8 : index
    %c0_5 = arith.constant 0 : index
    %3 = vector.load %arg21[%c8_4, %c0_5] : memref<128x143xf32, #tpu.memory_space<vmem>>, vector<8x143xf32>
    tpu.vector_store %arg21[%c8_4, %c0_5], %2 {strides = array<i32>} : memref<128x143xf32, #tpu.memory_space<vmem>>, vector<8x143xf32>,
    %c0_6 = arith.constant 0 : index
    %c1 = arith.constant 1 : index
    %4 = vector.load %arg1[%c0_6, %c1] : memref<32x162xf32, #tpu.memory_space<vmem>>, vector<8x143xf32>
    %c16 = arith.constant 16 : index
    %c0_7 = arith.constant 0 : index
    %5 = vector.load %arg21[%c16, %c0_7] : memref<128x143xf32, #tpu.memory_space<vmem>>, vector<8x143xf32>
    tpu.vector_store %arg21[%c16, %c0_7], %4 {strides = array<i32>} : memref<128x143xf32, #tpu.memory_space<vmem>>, vector<8x143xf32>,
    %c8_8 = arith.constant 8 : index
    %c1_9 = arith.constant 1 : index
    %6 = vector.load %arg1[%c8_8, %c1_9] : memref<32x162xf32, #tpu.memory_space<vmem>>, vector<8x143xf32>
    %c24 = arith.constant 24 : index
    %c0_10 = arith.constant 0 : index
    %7 = vector.load %arg21[%c24, %c0_10] : memref<128x143xf32, #tpu.memory_space<vmem>>, vector<8x143xf32>
    tpu.vector_store %arg21[%c24, %c0_10], %6 {strides = array<i32>} : memref<128x143xf32, #tpu.memory_space<vmem>>, vector<8x143xf32>,
    %c16_11 = arith.constant 16 : index
    %c0_12 = arith.constant 0 : index
    %8 = vector.load %arg1[%c16_11, %c0_12] : memref<32x162xf32, #tpu.memory_space<vmem>>, vector<8x143xf32>
    %c32 = arith.constant 32 : index
    %c0_13 = arith.constant 0 : index
    %9 = vector.load %arg21[%c32, %c0_13] : memref<128x143xf32, #tpu.memory_space<vmem>>, vector<8x143xf32>
    tpu.vector_store %arg21[%c32, %c0_13], %8 {strides = array<i32>} : memref<128x143xf32, #tpu.memory_space<vmem>>, vector<8x143xf32>,
    %c24_14 = arith.constant 24 : index
    %c0_15 = arith.constant 0 : index
    %10 = vector.load %arg1[%c24_14, %c0_15] : memref<32x162xf32, #tpu.memory_space<vmem>>, vector<8x143xf32>
    %c40 = arith.constant 40 : index
    %c0_16 = arith.constant 0 : index
    %11 = vector.load %arg21[%c40, %c0_16] : memref<128x143xf32, #tpu.memory_space<vmem>>, vector<8x143xf32>
    tpu.vector_store %arg21[%c40, %c0_16], %10 {strides = array<i32>} : memref<128x143xf32, #tpu.memory_space<vmem>>, vector<8x143xf32>,
    %c16_17 = arith.constant 16 : index
    %c1_18 = arith.constant 1 : index
    %12 = vector.load %arg1[%c16_17, %c1_18] : memref<32x162xf32, #tpu.memory_space<vmem>>, vector<8x143xf32>
    %c48 = arith.constant 48 : index
    %c0_19 = arith.constant 0 : index
    %13 = vector.load %arg21[%c48, %c0_19] : memref<128x143xf32, #tpu.memory_space<vmem>>, vector<8x143xf32>
    tpu.vector_store %arg21[%c48, %c0_19], %12 {strides = array<i32>} : memref<128x143xf32, #tpu.memory_space<vmem>>, vector<8x143xf32>,
    %c24_20 = arith.constant 24 : index
    %c1_21 = arith.constant 1 : index
    %14 = vector.load %arg1[%c24_20, %c1_21] : memref<32x162xf32, #tpu.memory_space<vmem>>, vector<8x143xf32>
    %c56 = arith.constant 56 : index
    %c0_22 = arith.constant 0 : index
    %15 = vector.load %arg21[%c56, %c0_22] : memref<128x143xf32, #tpu.memory_space<vmem>>, vector<8x143xf32>
    tpu.vector_store %arg21[%c56, %c0_22], %14 {strides = array<i32>} : memref<128x143xf32, #tpu.memory_space<vmem>>, vector<8x143xf32>,
    %c0_23 = arith.constant 0 : index
    %c18 = arith.constant 18 : index
    %16 = vector.load %arg1[%c0_23, %c18] : memref<32x162xf32, #tpu.memory_space<vmem>>, vector<8x143xf32>
    %c64 = arith.constant 64 : index
    %c0_24 = arith.constant 0 : index
    %17 = vector.load %arg21[%c64, %c0_24] : memref<128x143xf32, #tpu.memory_space<vmem>>, vector<8x143xf32>
    tpu.vector_store %arg21[%c64, %c0_24], %16 {strides = array<i32>} : memref<128x143xf32, #tpu.memory_space<vmem>>, vector<8x143xf32>,
    %c8_25 = arith.constant 8 : index
    %c18_26 = arith.constant 18 : index
    %18 = vector.load %arg1[%c8_25, %c18_26] : memref<32x162xf32, #tpu.memory_space<vmem>>, vector<8x143xf32>
    %c72 = arith.constant 72 : index
    %c0_27 = arith.constant 0 : index
    %19 = vector.load %arg21[%c72, %c0_27] : memref<128x143xf32, #tpu.memory_space<vmem>>, vector<8x143xf32>
    tpu.vector_store %arg21[%c72, %c0_27], %18 {strides = array<i32>} : memref<128x143xf32, #tpu.memory_space<vmem>>, vector<8x143xf32>,
    %c0_28 = arith.constant 0 : index
    %c19 = arith.constant 19 : index
    %20 = vector.load %arg1[%c0_28, %c19] : memref<32x162xf32, #tpu.memory_space<vmem>>, vector<8x143xf32>
    %c80 = arith.constant 80 : index
    %c0_29 = arith.constant 0 : index
    %21 = vector.load %arg21[%c80, %c0_29] : memref<128x143xf32, #tpu.memory_space<vmem>>, vector<8x143xf32>
    tpu.vector_store %arg21[%c80, %c0_29], %20 {strides = array<i32>} : memref<128x143xf32, #tpu.memory_space<vmem>>, vector<8x143xf32>,
    %c8_30 = arith.constant 8 : index
    %c19_31 = arith.constant 19 : index
    %22 = vector.load %arg1[%c8_30, %c19_31] : memref<32x162xf32, #tpu.memory_space<vmem>>, vector<8x143xf32>
    %c88 = arith.constant 88 : index
    %c0_32 = arith.constant 0 : index
    %23 = vector.load %arg21[%c88, %c0_32] : memref<128x143xf32, #tpu.memory_space<vmem>>, vector<8x143xf32>
    tpu.vector_store %arg21[%c88, %c0_32], %22 {strides = array<i32>} : memref<128x143xf32, #tpu.memory_space<vmem>>, vector<8x143xf32>,
    %c16_33 = arith.constant 16 : index
    %c18_34 = arith.constant 18 : index
    %24 = vector.load %arg1[%c16_33, %c18_34] : memref<32x162xf32, #tpu.memory_space<vmem>>, vector<8x143xf32>
    %c96 = arith.constant 96 : index
    %c0_35 = arith.constant 0 : index
    %25 = vector.load %arg21[%c96, %c0_35] : memref<128x143xf32, #tpu.memory_space<vmem>>, vector<8x143xf32>
    tpu.vector_store %arg21[%c96, %c0_35], %24 {strides = array<i32>} : memref<128x143xf32, #tpu.memory_space<vmem>>, vector<8x143xf32>,
    %c24_36 = arith.constant 24 : index
    %c18_37 = arith.constant 18 : index
    %26 = vector.load %arg1[%c24_36, %c18_37] : memref<32x162xf32, #tpu.memory_space<vmem>>, vector<8x143xf32>
    %c104 = arith.constant 104 : index
    %c0_38 = arith.constant 0 : index
    %27 = vector.load %arg21[%c104, %c0_38] : memref<128x143xf32, #tpu.memory_space<vmem>>, vector<8x143xf32>
    tpu.vector_store %arg21[%c104, %c0_38], %26 {strides = array<i32>} : memref<128x143xf32, #tpu.memory_space<vmem>>, vector<8x143xf32>,
    %c16_39 = arith.constant 16 : index
    %c19_40 = arith.constant 19 : index
    %28 = vector.load %arg1[%c16_39, %c19_40] : memref<32x162xf32, #tpu.memory_space<vmem>>, vector<8x143xf32>
    %c112 = arith.constant 112 : index
    %c0_41 = arith.constant 0 : index
    %29 = vector.load %arg21[%c112, %c0_41] : memref<128x143xf32, #tpu.memory_space<vmem>>, vector<8x143xf32>
    tpu.vector_store %arg21[%c112, %c0_41], %28 {strides = array<i32>} : memref<128x143xf32, #tpu.memory_space<vmem>>, vector<8x143xf32>,
    %c24_42 = arith.constant 24 : index
    %c19_43 = arith.constant 19 : index
    %30 = vector.load %arg1[%c24_42, %c19_43] : memref<32x162xf32, #tpu.memory_space<vmem>>, vector<8x143xf32>
    %c120 = arith.constant 120 : index
    %c0_44 = arith.constant 0 : index
    %31 = vector.load %arg21[%c120, %c0_44] : memref<128x143xf32, #tpu.memory_space<vmem>>, vector<8x143xf32>
    tpu.vector_store %arg21[%c120, %c0_44], %30 {strides = array<i32>} : memref<128x143xf32, #tpu.memory_space<vmem>>, vector<8x143xf32>,
    %c0_45 = arith.constant 0 : index
    %c0_46 = arith.constant 0 : index
    %32 = vector.load %arg2[%c0_45, %c0_46] : memref<8x128xf32, #tpu.memory_space<vmem>>, vector<8x128xf32>
    %c0_47 = arith.constant 0 : index
    %c0_48 = arith.constant 0 : index
    %33 = vector.load %arg21[%c0_47, %c0_48] : memref<128x143xf32, #tpu.memory_space<vmem>>, vector<128x143xf32>
    %cst = arith.constant dense<0.000000e+00> : vector<8x143xf32>
    %34 = tpu.matmul %32, %33, %cst {dimension_numbers = #tpu.dot_dimension_numbers<[1], [0], [0], [1], [0, 0, 1, 1], [], []>} : vector<8x128xf32>, vector<128x143xf32>, vector<8x143xf32> -> vector<8x143xf32>
    %c0_49 = arith.constant 0 : index
    %c0_50 = arith.constant 0 : index
    %35 = vector.load %arg3[%c0_49, %c0_50] : memref<8x1xf32, #tpu.memory_space<vmem>>, vector<8x1xf32>
    %36 = vector.broadcast %35 : vector<8x1xf32> to vector<8x143xf32>
    %37 = arith.addf %34, %36 : vector<8x143xf32>
    %cst_51 = arith.constant 0.000000e+00 : f32
    %38 = vector.broadcast %cst_51 : f32 to vector<8x143xf32>
    %39 = arith.maximumf %37, %38 : vector<8x143xf32>
    %c0_52 = arith.constant 0 : index
    %c0_53 = arith.constant 0 : index
    %c0_54 = arith.constant 0 : index
    %40 = vector.load %arg16[%c0_52, %c0_53, %c0_54] : memref<4x143x50xf32, #tpu.memory_space<vmem>>, vector<1x143x50xf32>
    %41 = vector.shape_cast %40 : vector<1x143x50xf32> to vector<143x50xf32>
    %cst_55 = arith.constant dense<0.000000e+00> : vector<8x50xf32>
    %42 = tpu.matmul %39, %41, %cst_55 {dimension_numbers = #tpu.dot_dimension_numbers<[1], [0], [0], [1], [0, 0, 1, 1], [], []>} : vector<8x143xf32>, vector<143x50xf32>, vector<8x50xf32> -> vector<8x50xf32>
    %c1_56 = arith.constant 1 : index
    %c0_57 = arith.constant 0 : index
    %c0_58 = arith.constant 0 : index
    %43 = vector.load %arg16[%c1_56, %c0_57, %c0_58] : memref<4x143x50xf32, #tpu.memory_space<vmem>>, vector<1x143x50xf32>
    %44 = vector.shape_cast %43 : vector<1x143x50xf32> to vector<143x50xf32>
    %cst_59 = arith.constant dense<0.000000e+00> : vector<8x50xf32>
    %45 = tpu.matmul %39, %44, %cst_59 {dimension_numbers = #tpu.dot_dimension_numbers<[1], [0], [0], [1], [0, 0, 1, 1], [], []>} : vector<8x143xf32>, vector<143x50xf32>, vector<8x50xf32> -> vector<8x50xf32>
    %c2 = arith.constant 2 : index
    %c0_60 = arith.constant 0 : index
    %c0_61 = arith.constant 0 : index
    %46 = vector.load %arg16[%c2, %c0_60, %c0_61] : memref<4x143x50xf32, #tpu.memory_space<vmem>>, vector<1x143x50xf32>
    %47 = vector.shape_cast %46 : vector<1x143x50xf32> to vector<143x50xf32>
    %cst_62 = arith.constant dense<0.000000e+00> : vector<8x50xf32>
    %48 = tpu.matmul %39, %47, %cst_62 {dimension_numbers = #tpu.dot_dimension_numbers<[1], [0], [0], [1], [0, 0, 1, 1], [], []>} : vector<8x143xf32>, vector<143x50xf32>, vector<8x50xf32> -> vector<8x50xf32>
    %c3 = arith.constant 3 : index
    %c0_63 = arith.constant 0 : index
    %c0_64 = arith.constant 0 : index
    %49 = vector.load %arg16[%c3, %c0_63, %c0_64] : memref<4x143x50xf32, #tpu.memory_space<vmem>>, vector<1x143x50xf32>
    %50 = vector.shape_cast %49 : vector<1x143x50xf32> to vector<143x50xf32>
    %cst_65 = arith.constant dense<0.000000e+00> : vector<8x50xf32>
    %51 = tpu.matmul %39, %50, %cst_65 {dimension_numbers = #tpu.dot_dimension_numbers<[1], [0], [0], [1], [0, 0, 1, 1], [], []>} : vector<8x143xf32>, vector<143x50xf32>, vector<8x50xf32> -> vector<8x50xf32>
    %52 = vector.extract_strided_slice %42 {offsets = [0, 0], sizes = [8, 39], strides = [1, 1]} : vector<8x50xf32> to vector<8x39xf32>
    %c0_66 = arith.constant 0 : index
    %c0_67 = arith.constant 0 : index
    %53 = vector.load %arg22[%c0_66, %c0_67] : memref<128x39xf32, #tpu.memory_space<vmem>>, vector<8x39xf32>
    tpu.vector_store %arg22[%c0_66, %c0_67], %52 {strides = array<i32>} : memref<128x39xf32, #tpu.memory_space<vmem>>, vector<8x39xf32>,
    %54 = vector.extract_strided_slice %45 {offsets = [0, 0], sizes = [8, 39], strides = [1, 1]} : vector<8x50xf32> to vector<8x39xf32>
    %c8_68 = arith.constant 8 : index
    %c0_69 = arith.constant 0 : index
    %55 = vector.load %arg22[%c8_68, %c0_69] : memref<128x39xf32, #tpu.memory_space<vmem>>, vector<8x39xf32>
    tpu.vector_store %arg22[%c8_68, %c0_69], %54 {strides = array<i32>} : memref<128x39xf32, #tpu.memory_space<vmem>>, vector<8x39xf32>,
    %56 = vector.extract_strided_slice %42 {offsets = [0, 1], sizes = [8, 39], strides = [1, 1]} : vector<8x50xf32> to vector<8x39xf32>
    %c16_70 = arith.constant 16 : index
    %c0_71 = arith.constant 0 : index
    %57 = vector.load %arg22[%c16_70, %c0_71] : memref<128x39xf32, #tpu.memory_space<vmem>>, vector<8x39xf32>
    tpu.vector_store %arg22[%c16_70, %c0_71], %56 {strides = array<i32>} : memref<128x39xf32, #tpu.memory_space<vmem>>, vector<8x39xf32>,
    %58 = vector.extract_strided_slice %45 {offsets = [0, 1], sizes = [8, 39], strides = [1, 1]} : vector<8x50xf32> to vector<8x39xf32>
    %c24_72 = arith.constant 24 : index
    %c0_73 = arith.constant 0 : index
    %59 = vector.load %arg22[%c24_72, %c0_73] : memref<128x39xf32, #tpu.memory_space<vmem>>, vector<8x39xf32>
    tpu.vector_store %arg22[%c24_72, %c0_73], %58 {strides = array<i32>} : memref<128x39xf32, #tpu.memory_space<vmem>>, vector<8x39xf32>,
    %60 = vector.extract_strided_slice %48 {offsets = [0, 0], sizes = [8, 39], strides = [1, 1]} : vector<8x50xf32> to vector<8x39xf32>
    %c32_74 = arith.constant 32 : index
    %c0_75 = arith.constant 0 : index
    %61 = vector.load %arg22[%c32_74, %c0_75] : memref<128x39xf32, #tpu.memory_space<vmem>>, vector<8x39xf32>
    tpu.vector_store %arg22[%c32_74, %c0_75], %60 {strides = array<i32>} : memref<128x39xf32, #tpu.memory_space<vmem>>, vector<8x39xf32>,
    %62 = vector.extract_strided_slice %51 {offsets = [0, 0], sizes = [8, 39], strides = [1, 1]} : vector<8x50xf32> to vector<8x39xf32>
    %c40_76 = arith.constant 40 : index
    %c0_77 = arith.constant 0 : index
    %63 = vector.load %arg22[%c40_76, %c0_77] : memref<128x39xf32, #tpu.memory_space<vmem>>, vector<8x39xf32>
    tpu.vector_store %arg22[%c40_76, %c0_77], %62 {strides = array<i32>} : memref<128x39xf32, #tpu.memory_space<vmem>>, vector<8x39xf32>,
    %64 = vector.extract_strided_slice %48 {offsets = [0, 1], sizes = [8, 39], strides = [1, 1]} : vector<8x50xf32> to vector<8x39xf32>
    %c48_78 = arith.constant 48 : index
    %c0_79 = arith.constant 0 : index
    %65 = vector.load %arg22[%c48_78, %c0_79] : memref<128x39xf32, #tpu.memory_space<vmem>>, vector<8x39xf32>
    tpu.vector_store %arg22[%c48_78, %c0_79], %64 {strides = array<i32>} : memref<128x39xf32, #tpu.memory_space<vmem>>, vector<8x39xf32>,
    %66 = vector.extract_strided_slice %51 {offsets = [0, 1], sizes = [8, 39], strides = [1, 1]} : vector<8x50xf32> to vector<8x39xf32>
    %c56_80 = arith.constant 56 : index
    %c0_81 = arith.constant 0 : index
    %67 = vector.load %arg22[%c56_80, %c0_81] : memref<128x39xf32, #tpu.memory_space<vmem>>, vector<8x39xf32>
    tpu.vector_store %arg22[%c56_80, %c0_81], %66 {strides = array<i32>} : memref<128x39xf32, #tpu.memory_space<vmem>>, vector<8x39xf32>,
    %68 = vector.extract_strided_slice %42 {offsets = [0, 10], sizes = [8, 39], strides = [1, 1]} : vector<8x50xf32> to vector<8x39xf32>
    %c64_82 = arith.constant 64 : index
    %c0_83 = arith.constant 0 : index
    %69 = vector.load %arg22[%c64_82, %c0_83] : memref<128x39xf32, #tpu.memory_space<vmem>>, vector<8x39xf32>
    tpu.vector_store %arg22[%c64_82, %c0_83], %68 {strides = array<i32>} : memref<128x39xf32, #tpu.memory_space<vmem>>, vector<8x39xf32>,
    %70 = vector.extract_strided_slice %45 {offsets = [0, 10], sizes = [8, 39], strides = [1, 1]} : vector<8x50xf32> to vector<8x39xf32>
    %c72_84 = arith.constant 72 : index
    %c0_85 = arith.constant 0 : index
    %71 = vector.load %arg22[%c72_84, %c0_85] : memref<128x39xf32, #tpu.memory_space<vmem>>, vector<8x39xf32>
    tpu.vector_store %arg22[%c72_84, %c0_85], %70 {strides = array<i32>} : memref<128x39xf32, #tpu.memory_space<vmem>>, vector<8x39xf32>,
    %72 = vector.extract_strided_slice %42 {offsets = [0, 11], sizes = [8, 39], strides = [1, 1]} : vector<8x50xf32> to vector<8x39xf32>
    %c80_86 = arith.constant 80 : index
    %c0_87 = arith.constant 0 : index
    %73 = vector.load %arg22[%c80_86, %c0_87] : memref<128x39xf32, #tpu.memory_space<vmem>>, vector<8x39xf32>
    tpu.vector_store %arg22[%c80_86, %c0_87], %72 {strides = array<i32>} : memref<128x39xf32, #tpu.memory_space<vmem>>, vector<8x39xf32>,
    %74 = vector.extract_strided_slice %45 {offsets = [0, 11], sizes = [8, 39], strides = [1, 1]} : vector<8x50xf32> to vector<8x39xf32>
    %c88_88 = arith.constant 88 : index
    %c0_89 = arith.constant 0 : index
    %75 = vector.load %arg22[%c88_88, %c0_89] : memref<128x39xf32, #tpu.memory_space<vmem>>, vector<8x39xf32>
    tpu.vector_store %arg22[%c88_88, %c0_89], %74 {strides = array<i32>} : memref<128x39xf32, #tpu.memory_space<vmem>>, vector<8x39xf32>,
    %76 = vector.extract_strided_slice %48 {offsets = [0, 10], sizes = [8, 39], strides = [1, 1]} : vector<8x50xf32> to vector<8x39xf32>
    %c96_90 = arith.constant 96 : index
    %c0_91 = arith.constant 0 : index
    %77 = vector.load %arg22[%c96_90, %c0_91] : memref<128x39xf32, #tpu.memory_space<vmem>>, vector<8x39xf32>
    tpu.vector_store %arg22[%c96_90, %c0_91], %76 {strides = array<i32>} : memref<128x39xf32, #tpu.memory_space<vmem>>, vector<8x39xf32>,
    %78 = vector.extract_strided_slice %51 {offsets = [0, 10], sizes = [8, 39], strides = [1, 1]} : vector<8x50xf32> to vector<8x39xf32>
    %c104_92 = arith.constant 104 : index
    %c0_93 = arith.constant 0 : index
    %79 = vector.load %arg22[%c104_92, %c0_93] : memref<128x39xf32, #tpu.memory_space<vmem>>, vector<8x39xf32>
    tpu.vector_store %arg22[%c104_92, %c0_93], %78 {strides = array<i32>} : memref<128x39xf32, #tpu.memory_space<vmem>>, vector<8x39xf32>,
    %80 = vector.extract_strided_slice %48 {offsets = [0, 11], sizes = [8, 39], strides = [1, 1]} : vector<8x50xf32> to vector<8x39xf32>
    %c112_94 = arith.constant 112 : index
    %c0_95 = arith.constant 0 : index
    %81 = vector.load %arg22[%c112_94, %c0_95] : memref<128x39xf32, #tpu.memory_space<vmem>>, vector<8x39xf32>
    tpu.vector_store %arg22[%c112_94, %c0_95], %80 {strides = array<i32>} : memref<128x39xf32, #tpu.memory_space<vmem>>, vector<8x39xf32>,
    %82 = vector.extract_strided_slice %51 {offsets = [0, 11], sizes = [8, 39], strides = [1, 1]} : vector<8x50xf32> to vector<8x39xf32>
    %c120_96 = arith.constant 120 : index
    %c0_97 = arith.constant 0 : index
    %83 = vector.load %arg22[%c120_96, %c0_97] : memref<128x39xf32, #tpu.memory_space<vmem>>, vector<8x39xf32>
    tpu.vector_store %arg22[%c120_96, %c0_97], %82 {strides = array<i32>} : memref<128x39xf32, #tpu.memory_space<vmem>>, vector<8x39xf32>,
    %c0_98 = arith.constant 0 : index
    %c0_99 = arith.constant 0 : index
    %84 = vector.load %arg4[%c0_98, %c0_99] : memref<16x128xf32, #tpu.memory_space<vmem>>, vector<16x128xf32>
    %c0_100 = arith.constant 0 : index
    %c0_101 = arith.constant 0 : index
    %85 = vector.load %arg22[%c0_100, %c0_101] : memref<128x39xf32, #tpu.memory_space<vmem>>, vector<128x39xf32>
    %cst_102 = arith.constant dense<0.000000e+00> : vector<16x39xf32>
    %86 = tpu.matmul %84, %85, %cst_102 {dimension_numbers = #tpu.dot_dimension_numbers<[1], [0], [0], [1], [0, 0, 1, 1], [], []>} : vector<16x128xf32>, vector<128x39xf32>, vector<16x39xf32> -> vector<16x39xf32>
    %c0_103 = arith.constant 0 : index
    %c0_104 = arith.constant 0 : index
    %87 = vector.load %arg5[%c0_103, %c0_104] : memref<16x1xf32, #tpu.memory_space<vmem>>, vector<16x1xf32>
    %88 = vector.broadcast %87 : vector<16x1xf32> to vector<16x39xf32>
    %89 = arith.addf %86, %88 : vector<16x39xf32>
    %cst_105 = arith.constant 0.000000e+00 : f32
    %90 = vector.broadcast %cst_105 : f32 to vector<16x39xf32>
    %91 = arith.maximumf %89, %90 : vector<16x39xf32>
    %c0_106 = arith.constant 0 : index
    %c0_107 = arith.constant 0 : index
    %92 = vector.load %arg17[%c0_106, %c0_107] : memref<39x72xf32, #tpu.memory_space<vmem>>, vector<39x72xf32>
    %cst_108 = arith.constant dense<0.000000e+00> : vector<16x72xf32>
    %93 = tpu.matmul %91, %92, %cst_108 {dimension_numbers = #tpu.dot_dimension_numbers<[1], [0], [0], [1], [0, 0, 1, 1], [], []>} : vector<16x39xf32>, vector<39x72xf32>, vector<16x72xf32> -> vector<16x72xf32>
    %94 = vector.extract_strided_slice %93 {offsets = [0, 0], sizes = [16, 46], strides = [1, 1]} : vector<16x72xf32> to vector<16x46xf32>
    %c0_109 = arith.constant 0 : index
    %c0_110 = arith.constant 0 : index
    %95 = vector.load %arg23[%c0_109, %c0_110] : memref<144x46xf32, #tpu.memory_space<vmem>>, vector<16x46xf32>
    tpu.vector_store %arg23[%c0_109, %c0_110], %94 {strides = array<i32>} : memref<144x46xf32, #tpu.memory_space<vmem>>, vector<16x46xf32>,
    %96 = vector.extract_strided_slice %93 {offsets = [0, 1], sizes = [16, 46], strides = [1, 1]} : vector<16x72xf32> to vector<16x46xf32>
    %c16_111 = arith.constant 16 : index
    %c0_112 = arith.constant 0 : index
    %97 = vector.load %arg23[%c16_111, %c0_112] : memref<144x46xf32, #tpu.memory_space<vmem>>, vector<16x46xf32>
    tpu.vector_store %arg23[%c16_111, %c0_112], %96 {strides = array<i32>} : memref<144x46xf32, #tpu.memory_space<vmem>>, vector<16x46xf32>,
    %98 = vector.extract_strided_slice %93 {offsets = [0, 2], sizes = [16, 46], strides = [1, 1]} : vector<16x72xf32> to vector<16x46xf32>
    %c32_113 = arith.constant 32 : index
    %c0_114 = arith.constant 0 : index
    %99 = vector.load %arg23[%c32_113, %c0_114] : memref<144x46xf32, #tpu.memory_space<vmem>>, vector<16x46xf32>
    tpu.vector_store %arg23[%c32_113, %c0_114], %98 {strides = array<i32>} : memref<144x46xf32, #tpu.memory_space<vmem>>, vector<16x46xf32>,
    %100 = vector.extract_strided_slice %93 {offsets = [0, 12], sizes = [16, 46], strides = [1, 1]} : vector<16x72xf32> to vector<16x46xf32>
    %c48_115 = arith.constant 48 : index
    %c0_116 = arith.constant 0 : index
    %101 = vector.load %arg23[%c48_115, %c0_116] : memref<144x46xf32, #tpu.memory_space<vmem>>, vector<16x46xf32>
    tpu.vector_store %arg23[%c48_115, %c0_116], %100 {strides = array<i32>} : memref<144x46xf32, #tpu.memory_space<vmem>>, vector<16x46xf32>,
    %102 = vector.extract_strided_slice %93 {offsets = [0, 13], sizes = [16, 46], strides = [1, 1]} : vector<16x72xf32> to vector<16x46xf32>
    %c64_117 = arith.constant 64 : index
    %c0_118 = arith.constant 0 : index
    %103 = vector.load %arg23[%c64_117, %c0_118] : memref<144x46xf32, #tpu.memory_space<vmem>>, vector<16x46xf32>
    tpu.vector_store %arg23[%c64_117, %c0_118], %102 {strides = array<i32>} : memref<144x46xf32, #tpu.memory_space<vmem>>, vector<16x46xf32>,
    %104 = vector.extract_strided_slice %93 {offsets = [0, 14], sizes = [16, 46], strides = [1, 1]} : vector<16x72xf32> to vector<16x46xf32>
    %c80_119 = arith.constant 80 : index
    %c0_120 = arith.constant 0 : index
    %105 = vector.load %arg23[%c80_119, %c0_120] : memref<144x46xf32, #tpu.memory_space<vmem>>, vector<16x46xf32>
    tpu.vector_store %arg23[%c80_119, %c0_120], %104 {strides = array<i32>} : memref<144x46xf32, #tpu.memory_space<vmem>>, vector<16x46xf32>,
    %106 = vector.extract_strided_slice %93 {offsets = [0, 24], sizes = [16, 46], strides = [1, 1]} : vector<16x72xf32> to vector<16x46xf32>
    %c96_121 = arith.constant 96 : index
    %c0_122 = arith.constant 0 : index
    %107 = vector.load %arg23[%c96_121, %c0_122] : memref<144x46xf32, #tpu.memory_space<vmem>>, vector<16x46xf32>
    tpu.vector_store %arg23[%c96_121, %c0_122], %106 {strides = array<i32>} : memref<144x46xf32, #tpu.memory_space<vmem>>, vector<16x46xf32>,
    %108 = vector.extract_strided_slice %93 {offsets = [0, 25], sizes = [16, 46], strides = [1, 1]} : vector<16x72xf32> to vector<16x46xf32>
    %c112_123 = arith.constant 112 : index
    %c0_124 = arith.constant 0 : index
    %109 = vector.load %arg23[%c112_123, %c0_124] : memref<144x46xf32, #tpu.memory_space<vmem>>, vector<16x46xf32>
    tpu.vector_store %arg23[%c112_123, %c0_124], %108 {strides = array<i32>} : memref<144x46xf32, #tpu.memory_space<vmem>>, vector<16x46xf32>,
    %110 = vector.extract_strided_slice %93 {offsets = [0, 26], sizes = [16, 46], strides = [1, 1]} : vector<16x72xf32> to vector<16x46xf32>
    %c128 = arith.constant 128 : index
    %c0_125 = arith.constant 0 : index
    %111 = vector.load %arg23[%c128, %c0_125] : memref<144x46xf32, #tpu.memory_space<vmem>>, vector<16x46xf32>
    tpu.vector_store %arg23[%c128, %c0_125], %110 {strides = array<i32>} : memref<144x46xf32, #tpu.memory_space<vmem>>, vector<16x46xf32>,
    %c0_126 = arith.constant 0 : index
    %c0_127 = arith.constant 0 : index
    %112 = vector.load %arg6[%c0_126, %c0_127] : memref<16x144xf32, #tpu.memory_space<vmem>>, vector<16x144xf32>
    %c0_128 = arith.constant 0 : index
    %c0_129 = arith.constant 0 : index
    %113 = vector.load %arg23[%c0_128, %c0_129] : memref<144x46xf32, #tpu.memory_space<vmem>>, vector<144x46xf32>
    %cst_130 = arith.constant dense<0.000000e+00> : vector<16x46xf32>
    %114 = tpu.matmul %112, %113, %cst_130 {dimension_numbers = #tpu.dot_dimension_numbers<[1], [0], [0], [1], [0, 0, 1, 1], [], []>} : vector<16x144xf32>, vector<144x46xf32>, vector<16x46xf32> -> vector<16x46xf32>
    %c0_131 = arith.constant 0 : index
    %c0_132 = arith.constant 0 : index
    %115 = vector.load %arg7[%c0_131, %c0_132] : memref<16x1xf32, #tpu.memory_space<vmem>>, vector<16x1xf32>
    %116 = vector.broadcast %115 : vector<16x1xf32> to vector<16x46xf32>
    %117 = arith.addf %114, %116 : vector<16x46xf32>
    %c0_133 = arith.constant 0 : index
    %c0_134 = arith.constant 0 : index
    %118 = vector.load %arg18[%c0_133, %c0_134] : memref<46x72xf32, #tpu.memory_space<vmem>>, vector<46x72xf32>
    %cst_135 = arith.constant dense<0.000000e+00> : vector<16x72xf32>
    %119 = tpu.matmul %117, %118, %cst_135 {dimension_numbers = #tpu.dot_dimension_numbers<[1], [0], [0], [1], [0, 0, 1, 1], [], []>} : vector<16x46xf32>, vector<46x72xf32>, vector<16x72xf32> -> vector<16x72xf32>
    %cst_136 = arith.constant 0.000000e+00 : f32
    %120 = vector.broadcast %cst_136 : f32 to vector<16x72xf32>
    %121 = arith.maximumf %119, %120 : vector<16x72xf32>
    %122 = vector.extract_strided_slice %121 {offsets = [0, 0], sizes = [16, 46], strides = [1, 1]} : vector<16x72xf32> to vector<16x46xf32>
    %c0_137 = arith.constant 0 : index
    %c0_138 = arith.constant 0 : index
    %123 = vector.load %arg23[%c0_137, %c0_138] : memref<144x46xf32, #tpu.memory_space<vmem>>, vector<16x46xf32>
    tpu.vector_store %arg23[%c0_137, %c0_138], %122 {strides = array<i32>} : memref<144x46xf32, #tpu.memory_space<vmem>>, vector<16x46xf32>,
    %124 = vector.extract_strided_slice %121 {offsets = [0, 1], sizes = [16, 46], strides = [1, 1]} : vector<16x72xf32> to vector<16x46xf32>
    %c16_139 = arith.constant 16 : index
    %c0_140 = arith.constant 0 : index
    %125 = vector.load %arg23[%c16_139, %c0_140] : memref<144x46xf32, #tpu.memory_space<vmem>>, vector<16x46xf32>
    tpu.vector_store %arg23[%c16_139, %c0_140], %124 {strides = array<i32>} : memref<144x46xf32, #tpu.memory_space<vmem>>, vector<16x46xf32>,
    %126 = vector.extract_strided_slice %121 {offsets = [0, 2], sizes = [16, 46], strides = [1, 1]} : vector<16x72xf32> to vector<16x46xf32>
    %c32_141 = arith.constant 32 : index
    %c0_142 = arith.constant 0 : index
    %127 = vector.load %arg23[%c32_141, %c0_142] : memref<144x46xf32, #tpu.memory_space<vmem>>, vector<16x46xf32>
    tpu.vector_store %arg23[%c32_141, %c0_142], %126 {strides = array<i32>} : memref<144x46xf32, #tpu.memory_space<vmem>>, vector<16x46xf32>,
    %128 = vector.extract_strided_slice %121 {offsets = [0, 12], sizes = [16, 46], strides = [1, 1]} : vector<16x72xf32> to vector<16x46xf32>
    %c48_143 = arith.constant 48 : index
    %c0_144 = arith.constant 0 : index
    %129 = vector.load %arg23[%c48_143, %c0_144] : memref<144x46xf32, #tpu.memory_space<vmem>>, vector<16x46xf32>
    tpu.vector_store %arg23[%c48_143, %c0_144], %128 {strides = array<i32>} : memref<144x46xf32, #tpu.memory_space<vmem>>, vector<16x46xf32>,
    %130 = vector.extract_strided_slice %121 {offsets = [0, 13], sizes = [16, 46], strides = [1, 1]} : vector<16x72xf32> to vector<16x46xf32>
    %c64_145 = arith.constant 64 : index
    %c0_146 = arith.constant 0 : index
    %131 = vector.load %arg23[%c64_145, %c0_146] : memref<144x46xf32, #tpu.memory_space<vmem>>, vector<16x46xf32>
    tpu.vector_store %arg23[%c64_145, %c0_146], %130 {strides = array<i32>} : memref<144x46xf32, #tpu.memory_space<vmem>>, vector<16x46xf32>,
    %132 = vector.extract_strided_slice %121 {offsets = [0, 14], sizes = [16, 46], strides = [1, 1]} : vector<16x72xf32> to vector<16x46xf32>
    %c80_147 = arith.constant 80 : index
    %c0_148 = arith.constant 0 : index
    %133 = vector.load %arg23[%c80_147, %c0_148] : memref<144x46xf32, #tpu.memory_space<vmem>>, vector<16x46xf32>
    tpu.vector_store %arg23[%c80_147, %c0_148], %132 {strides = array<i32>} : memref<144x46xf32, #tpu.memory_space<vmem>>, vector<16x46xf32>,
    %134 = vector.extract_strided_slice %121 {offsets = [0, 24], sizes = [16, 46], strides = [1, 1]} : vector<16x72xf32> to vector<16x46xf32>
    %c96_149 = arith.constant 96 : index
    %c0_150 = arith.constant 0 : index
    %135 = vector.load %arg23[%c96_149, %c0_150] : memref<144x46xf32, #tpu.memory_space<vmem>>, vector<16x46xf32>
    tpu.vector_store %arg23[%c96_149, %c0_150], %134 {strides = array<i32>} : memref<144x46xf32, #tpu.memory_space<vmem>>, vector<16x46xf32>,
    %136 = vector.extract_strided_slice %121 {offsets = [0, 25], sizes = [16, 46], strides = [1, 1]} : vector<16x72xf32> to vector<16x46xf32>
    %c112_151 = arith.constant 112 : index
    %c0_152 = arith.constant 0 : index
    %137 = vector.load %arg23[%c112_151, %c0_152] : memref<144x46xf32, #tpu.memory_space<vmem>>, vector<16x46xf32>
    tpu.vector_store %arg23[%c112_151, %c0_152], %136 {strides = array<i32>} : memref<144x46xf32, #tpu.memory_space<vmem>>, vector<16x46xf32>,
    %138 = vector.extract_strided_slice %121 {offsets = [0, 26], sizes = [16, 46], strides = [1, 1]} : vector<16x72xf32> to vector<16x46xf32>
    %c128_153 = arith.constant 128 : index
    %c0_154 = arith.constant 0 : index
    %139 = vector.load %arg23[%c128_153, %c0_154] : memref<144x46xf32, #tpu.memory_space<vmem>>, vector<16x46xf32>
    tpu.vector_store %arg23[%c128_153, %c0_154], %138 {strides = array<i32>} : memref<144x46xf32, #tpu.memory_space<vmem>>, vector<16x46xf32>,
    %c0_155 = arith.constant 0 : index
    %c0_156 = arith.constant 0 : index
    %140 = vector.load %arg8[%c0_155, %c0_156] : memref<8x144xf32, #tpu.memory_space<vmem>>, vector<8x144xf32>
    %c0_157 = arith.constant 0 : index
    %c0_158 = arith.constant 0 : index
    %141 = vector.load %arg23[%c0_157, %c0_158] : memref<144x46xf32, #tpu.memory_space<vmem>>, vector<144x46xf32>
    %cst_159 = arith.constant dense<0.000000e+00> : vector<8x46xf32>
    %142 = tpu.matmul %140, %141, %cst_159 {dimension_numbers = #tpu.dot_dimension_numbers<[1], [0], [0], [1], [0, 0, 1, 1], [], []>} : vector<8x144xf32>, vector<144x46xf32>, vector<8x46xf32> -> vector<8x46xf32>
    %c0_160 = arith.constant 0 : index
    %c0_161 = arith.constant 0 : index
    %143 = vector.load %arg9[%c0_160, %c0_161] : memref<8x1xf32, #tpu.memory_space<vmem>>, vector<8x1xf32>
    %144 = vector.broadcast %143 : vector<8x1xf32> to vector<8x46xf32>
    %145 = arith.addf %142, %144 : vector<8x46xf32>
    %cst_162 = arith.constant 0.000000e+00 : f32
    %146 = vector.broadcast %cst_162 : f32 to vector<8x46xf32>
    %147 = arith.maximumf %145, %146 : vector<8x46xf32>
    %c0_163 = arith.constant 0 : index
    %c0_164 = arith.constant 0 : index
    %148 = vector.load %arg10[%c0_163, %c0_164] : memref<16x8xf32, #tpu.memory_space<vmem>>, vector<16x8xf32>
    %cst_165 = arith.constant dense<0.000000e+00> : vector<16x46xf32>
    %149 = tpu.matmul %148, %147, %cst_165 {dimension_numbers = #tpu.dot_dimension_numbers<[1], [0], [0], [1], [0, 0, 1, 1], [], []>} : vector<16x8xf32>, vector<8x46xf32>, vector<16x46xf32> -> vector<16x46xf32>
    %c0_166 = arith.constant 0 : index
    %c0_167 = arith.constant 0 : index
    %150 = vector.load %arg11[%c0_166, %c0_167] : memref<16x1xf32, #tpu.memory_space<vmem>>, vector<16x1xf32>
    %151 = vector.broadcast %150 : vector<16x1xf32> to vector<16x46xf32>
    %152 = arith.addf %149, %151 : vector<16x46xf32>
    %153 = vector.extract_strided_slice %119 {offsets = [0, 13], sizes = [16, 46], strides = [1, 1]} : vector<16x72xf32> to vector<16x46xf32>
    %154 = arith.addf %153, %152 : vector<16x46xf32>
    %c0_168 = arith.constant 0 : index
    %c0_169 = arith.constant 0 : index
    %155 = vector.load %arg18[%c0_168, %c0_169] : memref<46x72xf32, #tpu.memory_space<vmem>>, vector<46x72xf32>
    %cst_170 = arith.constant dense<0.000000e+00> : vector<16x72xf32>
    %156 = tpu.matmul %154, %155, %cst_170 {dimension_numbers = #tpu.dot_dimension_numbers<[1], [0], [0], [1], [0, 0, 1, 1], [], []>} : vector<16x46xf32>, vector<46x72xf32>, vector<16x72xf32> -> vector<16x72xf32>
    %cst_171 = arith.constant 0.000000e+00 : f32
    %157 = vector.broadcast %cst_171 : f32 to vector<16x72xf32>
    %158 = arith.maximumf %156, %157 : vector<16x72xf32>
    %159 = vector.extract_strided_slice %158 {offsets = [0, 0], sizes = [16, 46], strides = [1, 1]} : vector<16x72xf32> to vector<16x46xf32>
    %c0_172 = arith.constant 0 : index
    %c0_173 = arith.constant 0 : index
    %160 = vector.load %arg23[%c0_172, %c0_173] : memref<144x46xf32, #tpu.memory_space<vmem>>, vector<16x46xf32>
    tpu.vector_store %arg23[%c0_172, %c0_173], %159 {strides = array<i32>} : memref<144x46xf32, #tpu.memory_space<vmem>>, vector<16x46xf32>,
    %161 = vector.extract_strided_slice %158 {offsets = [0, 1], sizes = [16, 46], strides = [1, 1]} : vector<16x72xf32> to vector<16x46xf32>
    %c16_174 = arith.constant 16 : index
    %c0_175 = arith.constant 0 : index
    %162 = vector.load %arg23[%c16_174, %c0_175] : memref<144x46xf32, #tpu.memory_space<vmem>>, vector<16x46xf32>
    tpu.vector_store %arg23[%c16_174, %c0_175], %161 {strides = array<i32>} : memref<144x46xf32, #tpu.memory_space<vmem>>, vector<16x46xf32>,
    %163 = vector.extract_strided_slice %158 {offsets = [0, 2], sizes = [16, 46], strides = [1, 1]} : vector<16x72xf32> to vector<16x46xf32>
    %c32_176 = arith.constant 32 : index
    %c0_177 = arith.constant 0 : index
    %164 = vector.load %arg23[%c32_176, %c0_177] : memref<144x46xf32, #tpu.memory_space<vmem>>, vector<16x46xf32>
    tpu.vector_store %arg23[%c32_176, %c0_177], %163 {strides = array<i32>} : memref<144x46xf32, #tpu.memory_space<vmem>>, vector<16x46xf32>,
    %165 = vector.extract_strided_slice %158 {offsets = [0, 12], sizes = [16, 46], strides = [1, 1]} : vector<16x72xf32> to vector<16x46xf32>
    %c48_178 = arith.constant 48 : index
    %c0_179 = arith.constant 0 : index
    %166 = vector.load %arg23[%c48_178, %c0_179] : memref<144x46xf32, #tpu.memory_space<vmem>>, vector<16x46xf32>
    tpu.vector_store %arg23[%c48_178, %c0_179], %165 {strides = array<i32>} : memref<144x46xf32, #tpu.memory_space<vmem>>, vector<16x46xf32>,
    %167 = vector.extract_strided_slice %158 {offsets = [0, 13], sizes = [16, 46], strides = [1, 1]} : vector<16x72xf32> to vector<16x46xf32>
    %c64_180 = arith.constant 64 : index
    %c0_181 = arith.constant 0 : index
    %168 = vector.load %arg23[%c64_180, %c0_181] : memref<144x46xf32, #tpu.memory_space<vmem>>, vector<16x46xf32>
    tpu.vector_store %arg23[%c64_180, %c0_181], %167 {strides = array<i32>} : memref<144x46xf32, #tpu.memory_space<vmem>>, vector<16x46xf32>,
    %169 = vector.extract_strided_slice %158 {offsets = [0, 14], sizes = [16, 46], strides = [1, 1]} : vector<16x72xf32> to vector<16x46xf32>
    %c80_182 = arith.constant 80 : index
    %c0_183 = arith.constant 0 : index
    %170 = vector.load %arg23[%c80_182, %c0_183] : memref<144x46xf32, #tpu.memory_space<vmem>>, vector<16x46xf32>
    tpu.vector_store %arg23[%c80_182, %c0_183], %169 {strides = array<i32>} : memref<144x46xf32, #tpu.memory_space<vmem>>, vector<16x46xf32>,
    %171 = vector.extract_strided_slice %158 {offsets = [0, 24], sizes = [16, 46], strides = [1, 1]} : vector<16x72xf32> to vector<16x46xf32>
    %c96_184 = arith.constant 96 : index
    %c0_185 = arith.constant 0 : index
    %172 = vector.load %arg23[%c96_184, %c0_185] : memref<144x46xf32, #tpu.memory_space<vmem>>, vector<16x46xf32>
    tpu.vector_store %arg23[%c96_184, %c0_185], %171 {strides = array<i32>} : memref<144x46xf32, #tpu.memory_space<vmem>>, vector<16x46xf32>,
    %173 = vector.extract_strided_slice %158 {offsets = [0, 25], sizes = [16, 46], strides = [1, 1]} : vector<16x72xf32> to vector<16x46xf32>
    %c112_186 = arith.constant 112 : index
    %c0_187 = arith.constant 0 : index
    %174 = vector.load %arg23[%c112_186, %c0_187] : memref<144x46xf32, #tpu.memory_space<vmem>>, vector<16x46xf32>
    tpu.vector_store %arg23[%c112_186, %c0_187], %173 {strides = array<i32>} : memref<144x46xf32, #tpu.memory_space<vmem>>, vector<16x46xf32>,
    %175 = vector.extract_strided_slice %158 {offsets = [0, 26], sizes = [16, 46], strides = [1, 1]} : vector<16x72xf32> to vector<16x46xf32>
    %c128_188 = arith.constant 128 : index
    %c0_189 = arith.constant 0 : index
    %176 = vector.load %arg23[%c128_188, %c0_189] : memref<144x46xf32, #tpu.memory_space<vmem>>, vector<16x46xf32>
    tpu.vector_store %arg23[%c128_188, %c0_189], %175 {strides = array<i32>} : memref<144x46xf32, #tpu.memory_space<vmem>>, vector<16x46xf32>,
    %c0_190 = arith.constant 0 : index
    %c0_191 = arith.constant 0 : index
    %177 = vector.load %arg12[%c0_190, %c0_191] : memref<8x144xf32, #tpu.memory_space<vmem>>, vector<8x144xf32>
    %c0_192 = arith.constant 0 : index
    %c0_193 = arith.constant 0 : index
    %178 = vector.load %arg23[%c0_192, %c0_193] : memref<144x46xf32, #tpu.memory_space<vmem>>, vector<144x46xf32>
    %cst_194 = arith.constant dense<0.000000e+00> : vector<8x46xf32>
    %179 = tpu.matmul %177, %178, %cst_194 {dimension_numbers = #tpu.dot_dimension_numbers<[1], [0], [0], [1], [0, 0, 1, 1], [], []>} : vector<8x144xf32>, vector<144x46xf32>, vector<8x46xf32> -> vector<8x46xf32>
    %c0_195 = arith.constant 0 : index
    %c0_196 = arith.constant 0 : index
    %180 = vector.load %arg13[%c0_195, %c0_196] : memref<8x1xf32, #tpu.memory_space<vmem>>, vector<8x1xf32>
    %181 = vector.broadcast %180 : vector<8x1xf32> to vector<8x46xf32>
    %182 = arith.addf %179, %181 : vector<8x46xf32>
    %cst_197 = arith.constant 0.000000e+00 : f32
    %183 = vector.broadcast %cst_197 : f32 to vector<8x46xf32>
    %184 = arith.maximumf %182, %183 : vector<8x46xf32>
    %c0_198 = arith.constant 0 : index
    %c0_199 = arith.constant 0 : index
    %185 = vector.load %arg14[%c0_198, %c0_199] : memref<16x8xf32, #tpu.memory_space<vmem>>, vector<16x8xf32>
    %cst_200 = arith.constant dense<0.000000e+00> : vector<16x46xf32>
    %186 = tpu.matmul %185, %184, %cst_200 {dimension_numbers = #tpu.dot_dimension_numbers<[1], [0], [0], [1], [0, 0, 1, 1], [], []>} : vector<16x8xf32>, vector<8x46xf32>, vector<16x46xf32> -> vector<16x46xf32>
    %c0_201 = arith.constant 0 : index
    %c0_202 = arith.constant 0 : index
    %187 = vector.load %arg15[%c0_201, %c0_202] : memref<16x1xf32, #tpu.memory_space<vmem>>, vector<16x1xf32>
    %188 = vector.broadcast %187 : vector<16x1xf32> to vector<16x46xf32>
    %189 = arith.addf %186, %188 : vector<16x46xf32>
    %190 = vector.extract_strided_slice %156 {offsets = [0, 13], sizes = [16, 46], strides = [1, 1]} : vector<16x72xf32> to vector<16x46xf32>
    %191 = arith.addf %190, %189 : vector<16x46xf32>
    %cst_203 = arith.constant 0.000000e+00 : f32
    %192 = vector.broadcast %cst_203 : f32 to vector<16x46xf32>
    %193 = arith.maximumf %191, %192 : vector<16x46xf32>
    %c0_204 = arith.constant 0 : index
    %c0_205 = arith.constant 0 : index
    %194 = vector.load %arg19[%c0_204, %c0_205] : memref<46x128xf32, #tpu.memory_space<vmem>>, vector<46x128xf32>
    %cst_206 = arith.constant dense<0.000000e+00> : vector<16x128xf32>
    %195 = tpu.matmul %193, %194, %cst_206 {dimension_numbers = #tpu.dot_dimension_numbers<[1], [0], [0], [1], [0, 0, 1, 1], [], []>} : vector<16x46xf32>, vector<46x128xf32>, vector<16x128xf32> -> vector<16x128xf32>
    %c0_207 = arith.constant 0 : index
    %c0_208 = arith.constant 0 : index
    %196 = vector.load %arg20[%c0_207, %c0_208] : memref<16x128xf32, #tpu.memory_space<vmem>>, vector<16x128xf32>
    tpu.vector_store %arg20[%c0_207, %c0_208], %195 {strides = array<i32>} : memref<16x128xf32, #tpu.memory_space<vmem>>, vector<16x128xf32>,
    return
  }
  func.func @transform_0(%arg0: i32) -> (i32, i32) {
    %c0_i32 = arith.constant 0 : i32
    %c0_i32_0 = arith.constant 0 : i32
    %c0_i32_1 = arith.constant 0 : i32
    return %c0_i32, %c0_i32_0 : i32, i32
  }
  func.func @transform_1(%arg0: i32) -> (i32, i32) {
    %c0_i32 = arith.constant 0 : i32
    %c0_i32_0 = arith.constant 0 : i32
    %c0_i32_1 = arith.constant 0 : i32
    return %c0_i32, %c0_i32_0 : i32, i32
  }
  func.func @transform_2(%arg0: i32) -> (i32, i32) {
    %c0_i32 = arith.constant 0 : i32
    %c0_i32_0 = arith.constant 0 : i32
    %c0_i32_1 = arith.constant 0 : i32
    return %c0_i32, %c0_i32_0 : i32, i32
  }
  func.func @transform_3(%arg0: i32) -> (i32, i32) {
    %c0_i32 = arith.constant 0 : i32
    %c0_i32_0 = arith.constant 0 : i32
    %c0_i32_1 = arith.constant 0 : i32
    return %c0_i32, %c0_i32_0 : i32, i32
  }
  func.func @transform_4(%arg0: i32) -> (i32, i32) {
    %c0_i32 = arith.constant 0 : i32
    %c0_i32_0 = arith.constant 0 : i32
    %c0_i32_1 = arith.constant 0 : i32
    return %c0_i32, %c0_i32_0 : i32, i32
  }
  func.func @transform_5(%arg0: i32) -> (i32, i32) {
    %c0_i32 = arith.constant 0 : i32
    %c0_i32_0 = arith.constant 0 : i32
    %c0_i32_1 = arith.constant 0 : i32
    return %c0_i32, %c0_i32_0 : i32, i32
  }
  func.func @transform_6(%arg0: i32) -> (i32, i32) {
    %c0_i32 = arith.constant 0 : i32
    %c0_i32_0 = arith.constant 0 : i32
    %c0_i32_1 = arith.constant 0 : i32
    return %c0_i32, %c0_i32_0 : i32, i32
  }
  func.func @transform_7(%arg0: i32) -> (i32, i32) {
    %c0_i32 = arith.constant 0 : i32
    %c0_i32_0 = arith.constant 0 : i32
    %c0_i32_1 = arith.constant 0 : i32
    return %c0_i32, %c0_i32_0 : i32, i32
  }
  func.func @transform_8(%arg0: i32) -> (i32, i32) {
    %c0_i32 = arith.constant 0 : i32
    %c0_i32_0 = arith.constant 0 : i32
    %c0_i32_1 = arith.constant 0 : i32
    return %c0_i32, %c0_i32_0 : i32, i32
  }
  func.func @transform_9(%arg0: i32) -> (i32, i32) {
    %c0_i32 = arith.constant 0 : i32
    %c0_i32_0 = arith.constant 0 : i32
    %c0_i32_1 = arith.constant 0 : i32
    return %c0_i32, %c0_i32_0 : i32, i32
  }
  func.func @transform_10(%arg0: i32) -> (i32, i32) {
    %c0_i32 = arith.constant 0 : i32
    %c0_i32_0 = arith.constant 0 : i32
    %c0_i32_1 = arith.constant 0 : i32
    return %c0_i32, %c0_i32_0 : i32, i32
  }
  func.func @transform_11(%arg0: i32) -> (i32, i32) {
    %c0_i32 = arith.constant 0 : i32
    %c0_i32_0 = arith.constant 0 : i32
    %c0_i32_1 = arith.constant 0 : i32
    return %c0_i32, %c0_i32_0 : i32, i32
  }
  func.func @transform_12(%arg0: i32) -> (i32, i32) {
    %c0_i32 = arith.constant 0 : i32
    %c0_i32_0 = arith.constant 0 : i32
    %c0_i32_1 = arith.constant 0 : i32
    return %c0_i32, %c0_i32_0 : i32, i32
  }
  func.func @transform_13(%arg0: i32) -> (i32, i32) {
    %c0_i32 = arith.constant 0 : i32
    %c0_i32_0 = arith.constant 0 : i32
    %c0_i32_1 = arith.constant 0 : i32
    return %c0_i32, %c0_i32_0 : i32, i32
  }
  func.func @transform_14(%arg0: i32) -> (i32, i32) {
    %c0_i32 = arith.constant 0 : i32
    %c0_i32_0 = arith.constant 0 : i32
    %c0_i32_1 = arith.constant 0 : i32
    return %c0_i32, %c0_i32_0 : i32, i32
  }
  func.func @transform_15(%arg0: i32) -> (i32, i32, i32) {
    %c0_i32 = arith.constant 0 : i32
    %c0_i32_0 = arith.constant 0 : i32
    %c0_i32_1 = arith.constant 0 : i32
    %c0_i32_2 = arith.constant 0 : i32
    return %c0_i32, %c0_i32_0, %c0_i32_1 : i32, i32, i32
  }
  func.func @transform_16(%arg0: i32) -> (i32, i32) {
    %c0_i32 = arith.constant 0 : i32
    %c0_i32_0 = arith.constant 0 : i32
    %c0_i32_1 = arith.constant 0 : i32
    return %c0_i32, %c0_i32_0 : i32, i32
  }
  func.func @transform_17(%arg0: i32) -> (i32, i32) {
    %c0_i32 = arith.constant 0 : i32
    %c0_i32_0 = arith.constant 0 : i32
    %c0_i32_1 = arith.constant 0 : i32
    return %c0_i32, %c0_i32_0 : i32, i32
  }
  func.func @transform_18(%arg0: i32) -> (i32, i32) {
    %c0_i32 = arith.constant 0 : i32
    %c0_i32_0 = arith.constant 0 : i32
    %c0_i32_1 = arith.constant 0 : i32
    return %c0_i32, %c0_i32_0 : i32, i32
  }
  func.func @transform_19(%arg0: i32) -> (i32, i32) {
    %c0_i32 = arith.constant 0 : i32
    %c0_i32_0 = arith.constant 0 : i32
    %c0_i32_1 = arith.constant 0 : i32
    return %c0_i32, %c0_i32_0 : i32, i32
  }
}

</mosaic_0001>

<llo_original>
// kernel: encoder_block_forward.1
$region0: #{encoder_block_forward.1}
  #allocation0 [shape = 'u32[]', space=smem, size = 0x4, offset = 0x4, fixed_abs, tag = 'smem constant byte address 0x4 - core index']
  #allocation1 [shape = 'u32[72,128]{1,0:T(1,128)}', space=vmem, size = 0x9000, scoped, tag = 'internal scratch']
  #allocation2 [shape = 'f32[128,143]{1,0:T(8,128)}', space=vmem, size = 0x20000, scoped, tag = 'scratch operand']
  #allocation3 [shape = 'f32[128,39]{1,0:T(8,128)}', space=vmem, size = 0x10000, scoped, tag = 'scratch operand']
  #allocation4 [shape = 'f32[144,46]{1,0:T(8,128)}', space=vmem, size = 0x12000, scoped, tag = 'scratch operand']
  %s0 = inlined_call_operand.vmem [shape: f32[32,162], index: 0, kind: input, shape index: {}]
  %s1 = inlined_call_operand.vmem [shape: f32[8,128], index: 1, kind: input, shape index: {}]
  %s2 = inlined_call_operand.vmem [shape: f32[8,1], index: 2, kind: input, shape index: {}]
  %s3 = inlined_call_operand.vmem [shape: f32[16,128], index: 3, kind: input, shape index: {}]
  %s4 = inlined_call_operand.vmem [shape: f32[16,1], index: 4, kind: input, shape index: {}]
  %s5 = inlined_call_operand.vmem [shape: f32[16,144], index: 5, kind: input, shape index: {}]
  %s6 = inlined_call_operand.vmem [shape: f32[16,1], index: 6, kind: input, shape index: {}]
  %s7 = inlined_call_operand.vmem [shape: f32[8,144], index: 7, kind: input, shape index: {}]
  %s8 = inlined_call_operand.vmem [shape: f32[8,1], index: 8, kind: input, shape index: {}]
  %s9 = inlined_call_operand.vmem [shape: f32[16,8], index: 9, kind: input, shape index: {}]
  %s10 = inlined_call_operand.vmem [shape: f32[16,1], index: 10, kind: input, shape index: {}]
  %s11 = inlined_call_operand.vmem [shape: f32[8,144], index: 11, kind: input, shape index: {}]
  %s12 = inlined_call_operand.vmem [shape: f32[8,1], index: 12, kind: input, shape index: {}]
  %s13 = inlined_call_operand.vmem [shape: f32[16,8], index: 13, kind: input, shape index: {}]
  %s14 = inlined_call_operand.vmem [shape: f32[16,1], index: 14, kind: input, shape index: {}]
  %s15 = inlined_call_operand.vmem [shape: f32[4,143,50], index: 15, kind: input, shape index: {}]
  %s16 = inlined_call_operand.vmem [shape: f32[39,72], index: 16, kind: input, shape index: {}]
  %s17 = inlined_call_operand.vmem [shape: f32[46,72], index: 17, kind: input, shape index: {}]
  %s18 = inlined_call_operand.vmem [shape: f32[46,128], index: 18, kind: input, shape index: {}]
  %s19 = inlined_call_operand.vmem [shape: f32[16,128], index: 19, kind: output, shape index: {}]
  %s20 = sld [smem:[#allocation0]]
  $region86: #{encoder_block_forward.1} parent=0
    _
  %s22 = ssub.s32 1, %s20
  %s23 = scalar_select 0, %s22, %s20
  // Predicated region
  $region2: #{encoder_block_forward.1} parent=0 // pred_check
    _
  $region3: #{encoder_block_forward.1} parent=0 // pred_check_branch
    %25 = sbr.rel (0) target = $region5
  $region4: #{encoder_block_forward.1} parent=0 // pred_region
    _
  $region5: #{encoder_block_forward.1} parent=0 // pred_fallthru
    _
  // Predicated region
  $region6: #{encoder_block_forward.1} parent=0 // pred_check
    _
  $region7: #{encoder_block_forward.1} parent=0 // pred_check_branch
    %27 = sbr.rel (0) target = $region9
  $region8: #{encoder_block_forward.1} parent=0 // pred_region
    _
  $region9: #{encoder_block_forward.1} parent=0 // pred_fallthru
    _
  // Predicated region
  $region10: #{encoder_block_forward.1} parent=0 // pred_check
    _
  $region11: #{encoder_block_forward.1} parent=0 // pred_check_branch
    %29 = sbr.rel (0) target = $region13
  $region12: #{encoder_block_forward.1} parent=0 // pred_region
    _
  $region13: #{encoder_block_forward.1} parent=0 // pred_fallthru
    _
  // Predicated region
  $region14: #{encoder_block_forward.1} parent=0 // pred_check
    _
  $region15: #{encoder_block_forward.1} parent=0 // pred_check_branch
    %31 = sbr.rel (0) target = $region17
  $region16: #{encoder_block_forward.1} parent=0 // pred_region
    _
  $region17: #{encoder_block_forward.1} parent=0 // pred_fallthru
    _
  // Predicated region
  $region18: #{encoder_block_forward.1} parent=0 // pred_check
    _
  $region19: #{encoder_block_forward.1} parent=0 // pred_check_branch
    %33 = sbr.rel (0) target = $region21
  $region20: #{encoder_block_forward.1} parent=0 // pred_region
    _
  $region21: #{encoder_block_forward.1} parent=0 // pred_fallthru
    _
  // Predicated region
  $region22: #{encoder_block_forward.1} parent=0 // pred_check
    _
  $region23: #{encoder_block_forward.1} parent=0 // pred_check_branch
    %35 = sbr.rel (0) target = $region25
  $region24: #{encoder_block_forward.1} parent=0 // pred_region
    _
  $region25: #{encoder_block_forward.1} parent=0 // pred_fallthru
    _
  // Predicated region
  $region26: #{encoder_block_forward.1} parent=0 // pred_check
    _
  $region27: #{encoder_block_forward.1} parent=0 // pred_check_branch
    %37 = sbr.rel (0) target = $region29
  $region28: #{encoder_block_forward.1} parent=0 // pred_region
    _
  $region29: #{encoder_block_forward.1} parent=0 // pred_fallthru
    _
  // Predicated region
  $region30: #{encoder_block_forward.1} parent=0 // pred_check
    _
  $region31: #{encoder_block_forward.1} parent=0 // pred_check_branch
    %39 = sbr.rel (0) target = $region33
  $region32: #{encoder_block_forward.1} parent=0 // pred_region
    _
  $region33: #{encoder_block_forward.1} parent=0 // pred_fallthru
    _
  // Predicated region
  $region34: #{encoder_block_forward.1} parent=0 // pred_check
    _
  $region35: #{encoder_block_forward.1} parent=0 // pred_check_branch
    %41 = sbr.rel (0) target = $region37
  $region36: #{encoder_block_forward.1} parent=0 // pred_region
    _
  $region37: #{encoder_block_forward.1} parent=0 // pred_fallthru
    _
  // Predicated region
  $region38: #{encoder_block_forward.1} parent=0 // pred_check
    _
  $region39: #{encoder_block_forward.1} parent=0 // pred_check_branch
    %43 = sbr.rel (0) target = $region41
  $region40: #{encoder_block_forward.1} parent=0 // pred_region
    _
  $region41: #{encoder_block_forward.1} parent=0 // pred_fallthru
    _
  // Predicated region
  $region42: #{encoder_block_forward.1} parent=0 // pred_check
    _
  $region43: #{encoder_block_forward.1} parent=0 // pred_check_branch
    %45 = sbr.rel (0) target = $region45
  $region44: #{encoder_block_forward.1} parent=0 // pred_region
    _
  $region45: #{encoder_block_forward.1} parent=0 // pred_fallthru
    _
  // Predicated region
  $region46: #{encoder_block_forward.1} parent=0 // pred_check
    _
  $region47: #{encoder_block_forward.1} parent=0 // pred_check_branch
    %47 = sbr.rel (0) target = $region49
  $region48: #{encoder_block_forward.1} parent=0 // pred_region
    _
  $region49: #{encoder_block_forward.1} parent=0 // pred_fallthru
    _
  // Predicated region
  $region50: #{encoder_block_forward.1} parent=0 // pred_check
    _
  $region51: #{encoder_block_forward.1} parent=0 // pred_check_branch
    %49 = sbr.rel (0) target = $region53
  $region52: #{encoder_block_forward.1} parent=0 // pred_region
    _
  $region53: #{encoder_block_forward.1} parent=0 // pred_fallthru
    _
  // Predicated region
  $region54: #{encoder_block_forward.1} parent=0 // pred_check
    _
  $region55: #{encoder_block_forward.1} parent=0 // pred_check_branch
    %51 = sbr.rel (0) target = $region57
  $region56: #{encoder_block_forward.1} parent=0 // pred_region
    _
  $region57: #{encoder_block_forward.1} parent=0 // pred_fallthru
    _
  // Predicated region
  $region58: #{encoder_block_forward.1} parent=0 // pred_check
    _
  $region59: #{encoder_block_forward.1} parent=0 // pred_check_branch
    %53 = sbr.rel (0) target = $region61
  $region60: #{encoder_block_forward.1} parent=0 // pred_region
    _
  $region61: #{encoder_block_forward.1} parent=0 // pred_fallthru
    _
  // Predicated region
  $region62: #{encoder_block_forward.1} parent=0 // pred_check
    _
  $region63: #{encoder_block_forward.1} parent=0 // pred_check_branch
    %55 = sbr.rel (0) target = $region65
  $region64: #{encoder_block_forward.1} parent=0 // pred_region
    _
  $region65: #{encoder_block_forward.1} parent=0 // pred_fallthru
    _
  // Predicated region
  $region66: #{encoder_block_forward.1} parent=0 // pred_check
    _
  $region67: #{encoder_block_forward.1} parent=0 // pred_check_branch
    %57 = sbr.rel (0) target = $region69
  $region68: #{encoder_block_forward.1} parent=0 // pred_region
    _
  $region69: #{encoder_block_forward.1} parent=0 // pred_fallthru
    _
  // Predicated region
  $region70: #{encoder_block_forward.1} parent=0 // pred_check
    _
  $region71: #{encoder_block_forward.1} parent=0 // pred_check_branch
    %59 = sbr.rel (0) target = $region73
  $region72: #{encoder_block_forward.1} parent=0 // pred_region
    _
  $region73: #{encoder_block_forward.1} parent=0 // pred_fallthru
    _
  // Predicated region
  $region74: #{encoder_block_forward.1} parent=0 // pred_check
    _
  $region75: #{encoder_block_forward.1} parent=0 // pred_check_branch
    %61 = sbr.rel (0) target = $region77
  $region76: #{encoder_block_forward.1} parent=0 // pred_region
    _
  $region77: #{encoder_block_forward.1} parent=0 // pred_fallthru
    _
  %v62 = vld [vmem:[%s0] sm:$0xff]
  %v63 = vld [vmem:[%s0 + $0x8] sm:$0xff]
  %64 = vst [vmem:[#allocation2] sm:$0xff] %v62
  %vm65 = vcmask 121856
  %66 = vst.msk [vmem:[#allocation2 + $0x8] sm:$0xff] %vm65, %v63
  %v67 = vld [vmem:[%s0 + $0x10] sm:$0xff]
  %v68 = vld [vmem:[%s0 + $0x18] sm:$0xff]
  %69 = vst [vmem:[#allocation2 + $0x10] sm:$0xff] %v67
  %70 = vst.msk [vmem:[#allocation2 + $0x18] sm:$0xff] %vm65, %v68
  %v71 = vld [vmem:[%s0] sm:$0xff]
  %v72 = vld [vmem:[%s0 + $0x8] sm:$0xff]
  %75 = vrot.lane.b32.xlu0 %v71, 127
  %v76 = vpop.permute.xlu0 %75
  %77 = vrot.lane.b32.xlu0 %v72, 127
  %v78 = vpop.permute.xlu0 %77
  %vm79 = vcmask 1039360
  %v80 = vsel %vm79, %v76, %v78
  %83 = vst [vmem:[#allocation2 + $0x20] sm:$0xff] %v80
  %84 = vst.msk [vmem:[#allocation2 + $0x28] sm:$0xff] %vm65, %v78
  %v85 = vld [vmem:[%s0 + $0x10] sm:$0xff]
  %v86 = vld [vmem:[%s0 + $0x18] sm:$0xff]
  %89 = vrot.lane.b32.xlu0 %v85, 127
  %v90 = vpop.permute.xlu0 %89
  %91 = vrot.lane.b32.xlu0 %v86, 127
  %v92 = vpop.permute.xlu0 %91
  %v93 = vsel %vm79, %v90, %v92
  %96 = vst [vmem:[#allocation2 + $0x30] sm:$0xff] %v93
  %97 = vst.msk [vmem:[#allocation2 + $0x38] sm:$0xff] %vm65, %v92
  %v98 = vld [vmem:[%s0 + $0x20] sm:$0xff]
  %v99 = vld [vmem:[%s0 + $0x28] sm:$0xff]
  %100 = vst [vmem:[#allocation2 + $0x40] sm:$0xff] %v98
  %101 = vst.msk [vmem:[#allocation2 + $0x48] sm:$0xff] %vm65, %v99
  %v102 = vld [vmem:[%s0 + $0x30] sm:$0xff]
  %v103 = vld [vmem:[%s0 + $0x38] sm:$0xff]
  %104 = vst [vmem:[#allocation2 + $0x50] sm:$0xff] %v102
  %105 = vst.msk [vmem:[#allocation2 + $0x58] sm:$0xff] %vm65, %v103
  %v106 = vld [vmem:[%s0 + $0x20] sm:$0xff]
  %v107 = vld [vmem:[%s0 + $0x28] sm:$0xff]
  %110 = vrot.lane.b32.xlu0 %v106, 127
  %v111 = vpop.permute.xlu0 %110
  %112 = vrot.lane.b32.xlu0 %v107, 127
  %v113 = vpop.permute.xlu0 %112
  %v114 = vsel %vm79, %v111, %v113
  %117 = vst [vmem:[#allocation2 + $0x60] sm:$0xff] %v114
  %118 = vst.msk [vmem:[#allocation2 + $0x68] sm:$0xff] %vm65, %v113
  %v119 = vld [vmem:[%s0 + $0x30] sm:$0xff]
  %v120 = vld [vmem:[%s0 + $0x38] sm:$0xff]
  %123 = vrot.lane.b32.xlu0 %v119, 127
  %v124 = vpop.permute.xlu0 %123
  %125 = vrot.lane.b32.xlu0 %v120, 127
  %v126 = vpop.permute.xlu0 %125
  %v127 = vsel %vm79, %v124, %v126
  %130 = vst [vmem:[#allocation2 + $0x70] sm:$0xff] %v127
  %131 = vst.msk [vmem:[#allocation2 + $0x78] sm:$0xff] %vm65, %v126
  %v132 = vld [vmem:[%s0] sm:$0xff]
  %v133 = vld [vmem:[%s0 + $0x8] sm:$0xff]
  %136 = vrot.lane.b32.xlu0 %v132, 110
  %v137 = vpop.permute.xlu0 %136
  %138 = vrot.lane.b32.xlu0 %v133, 110
  %v139 = vpop.permute.xlu0 %138
  %vm140 = vcmask 900096
  %v141 = vsel %vm140, %v137, %v139
  %144 = vst [vmem:[#allocation2 + $0x80] sm:$0xff] %v141
  %145 = vst.msk [vmem:[#allocation2 + $0x88] sm:$0xff] %vm65, %v139
  %v146 = vld [vmem:[%s0 + $0x10] sm:$0xff]
  %v147 = vld [vmem:[%s0 + $0x18] sm:$0xff]
  %150 = vrot.lane.b32.xlu0 %v146, 110
  %v151 = vpop.permute.xlu0 %150
  %152 = vrot.lane.b32.xlu0 %v147, 110
  %v153 = vpop.permute.xlu0 %152
  %v154 = vsel %vm140, %v151, %v153
  %157 = vst [vmem:[#allocation2 + $0x90] sm:$0xff] %v154
  %158 = vst.msk [vmem:[#allocation2 + $0x98] sm:$0xff] %vm65, %v153
  %v159 = vld [vmem:[%s0] sm:$0xff]
  %v160 = vld [vmem:[%s0 + $0x8] sm:$0xff]
  %163 = vrot.lane.b32.xlu0 %v159, 109
  %v164 = vpop.permute.xlu0 %163
  %165 = vrot.lane.b32.xlu0 %v160, 109
  %v166 = vpop.permute.xlu0 %165
  %vm167 = vcmask 891904
  %v168 = vsel %vm167, %v164, %v166
  %171 = vst [vmem:[#allocation2 + $0xa0] sm:$0xff] %v168
  %172 = vst.msk [vmem:[#allocation2 + $0xa8] sm:$0xff] %vm65, %v166
  %v173 = vld [vmem:[%s0 + $0x10] sm:$0xff]
  %v174 = vld [vmem:[%s0 + $0x18] sm:$0xff]
  %177 = vrot.lane.b32.xlu0 %v173, 109
  %v178 = vpop.permute.xlu0 %177
  %179 = vrot.lane.b32.xlu0 %v174, 109
  %v180 = vpop.permute.xlu0 %179
  %v181 = vsel %vm167, %v178, %v180
  %184 = vst [vmem:[#allocation2 + $0xb0] sm:$0xff] %v181
  %185 = vst.msk [vmem:[#allocation2 + $0xb8] sm:$0xff] %vm65, %v180
  %v186 = vld [vmem:[%s0 + $0x20] sm:$0xff]
  %v187 = vld [vmem:[%s0 + $0x28] sm:$0xff]
  %190 = vrot.lane.b32.xlu0 %v186, 110
  %v191 = vpop.permute.xlu0 %190
  %192 = vrot.lane.b32.xlu0 %v187, 110
  %v193 = vpop.permute.xlu0 %192
  %v194 = vsel %vm140, %v191, %v193
  %197 = vst [vmem:[#allocation2 + $0xc0] sm:$0xff] %v194
  %198 = vst.msk [vmem:[#allocation2 + $0xc8] sm:$0xff] %vm65, %v193
  %v199 = vld [vmem:[%s0 + $0x30] sm:$0xff]
  %v200 = vld [vmem:[%s0 + $0x38] sm:$0xff]
  %203 = vrot.lane.b32.xlu0 %v199, 110
  %v204 = vpop.permute.xlu0 %203
  %205 = vrot.lane.b32.xlu0 %v200, 110
  %v206 = vpop.permute.xlu0 %205
  %v207 = vsel %vm140, %v204, %v206
  %210 = vst [vmem:[#allocation2 + $0xd0] sm:$0xff] %v207
  %211 = vst.msk [vmem:[#allocation2 + $0xd8] sm:$0xff] %vm65, %v206
  %v212 = vld [vmem:[%s0 + $0x20] sm:$0xff]
  %v213 = vld [vmem:[%s0 + $0x28] sm:$0xff]
  %216 = vrot.lane.b32.xlu0 %v212, 109
  %v217 = vpop.permute.xlu0 %216
  %218 = vrot.lane.b32.xlu0 %v213, 109
  %v219 = vpop.permute.xlu0 %218
  %v220 = vsel %vm167, %v217, %v219
  %223 = vst [vmem:[#allocation2 + $0xe0] sm:$0xff] %v220
  %224 = vst.msk [vmem:[#allocation2 + $0xe8] sm:$0xff] %vm65, %v219
  %v225 = vld [vmem:[%s0 + $0x30] sm:$0xff]
  %v226 = vld [vmem:[%s0 + $0x38] sm:$0xff]
  %229 = vrot.lane.b32.xlu0 %v225, 109
  %v230 = vpop.permute.xlu0 %229
  %231 = vrot.lane.b32.xlu0 %v226, 109
  %v232 = vpop.permute.xlu0 %231
  %v233 = vsel %vm167, %v230, %v232
  %236 = vst [vmem:[#allocation2 + $0xf0] sm:$0xff] %v233
  %237 = vst.msk [vmem:[#allocation2 + $0xf8] sm:$0xff] %vm65, %v232
  %v238 = vld [vmem:[%s1] sm:$0xff]
  %v239 = vld [vmem:[#allocation2] sm:$0xff]
  %v240 = vld [vmem:[#allocation2 + $0x8] sm:$0xff]
  %v241 = vld [vmem:[#allocation2 + $0x10] sm:$0xff]
  %v242 = vld [vmem:[#allocation2 + $0x18] sm:$0xff]
  %v243 = vld [vmem:[#allocation2 + $0x20] sm:$0xff]
  %v244 = vld [vmem:[#allocation2 + $0x28] sm:$0xff]
  %v245 = vld [vmem:[#allocation2 + $0x30] sm:$0xff]
  %v246 = vld [vmem:[#allocation2 + $0x38] sm:$0xff]
  %v247 = vld [vmem:[#allocation2 + $0x40] sm:$0xff]
  %v248 = vld [vmem:[#allocation2 + $0x48] sm:$0xff]
  %v249 = vld [vmem:[#allocation2 + $0x50] sm:$0xff]
  %v250 = vld [vmem:[#allocation2 + $0x58] sm:$0xff]
  %v251 = vld [vmem:[#allocation2 + $0x60] sm:$0xff]
  %v252 = vld [vmem:[#allocation2 + $0x68] sm:$0xff]
  %v253 = vld [vmem:[#allocation2 + $0x70] sm:$0xff]
  %v254 = vld [vmem:[#allocation2 + $0x78] sm:$0xff]
  %v255 = vld [vmem:[#allocation2 + $0x80] sm:$0xff]
  %v256 = vld [vmem:[#allocation2 + $0x88] sm:$0xff]
  %v257 = vld [vmem:[#allocation2 + $0x90] sm:$0xff]
  %v258 = vld [vmem:[#allocation2 + $0x98] sm:$0xff]
  %v259 = vld [vmem:[#allocation2 + $0xa0] sm:$0xff]
  %v260 = vld [vmem:[#allocation2 + $0xa8] sm:$0xff]
  %v261 = vld [vmem:[#allocation2 + $0xb0] sm:$0xff]
  %v262 = vld [vmem:[#allocation2 + $0xb8] sm:$0xff]
  %v263 = vld [vmem:[#allocation2 + $0xc0] sm:$0xff]
  %v264 = vld [vmem:[#allocation2 + $0xc8] sm:$0xff]
  %v265 = vld [vmem:[#allocation2 + $0xd0] sm:$0xff]
  %v266 = vld [vmem:[#allocation2 + $0xd8] sm:$0xff]
  %v267 = vld [vmem:[#allocation2 + $0xe0] sm:$0xff]
  %v268 = vld [vmem:[#allocation2 + $0xe8] sm:$0xff]
  %v269 = vld [vmem:[#allocation2 + $0xf0] sm:$0xff]
  %v270 = vld [vmem:[#allocation2 + $0xf8] sm:$0xff]
  %v271 = vld [vmem:[%s2] sm:$0xff]
  %273 = vset.pattern.permute.xlu0 0
  %274 = vperm.xlu0 %273, %v271
  %v275 = vpop.permute.xlu0 %274
  %277 = vmatpush.msra.mxu0 %v269
  %278 = vmatpush.msra.mxu0 %v267
  %279 = vmatpush.msra.mxu0 %v265
  %280 = vmatpush.msra.mxu0 %v263
  %281 = vmatpush.msra.mxu0 %v261
  %282 = vmatpush.msra.mxu0 %v259
  %283 = vmatpush.msra.mxu0 %v257
  %284 = vmatpush.msra.mxu0 %v255
  %285 = vmatpush.msra.mxu0 %v253
  %286 = vmatpush.msra.mxu0 %v251
  %287 = vmatpush.msra.mxu0 %v249
  %288 = vmatpush.msra.mxu0 %v247
  %289 = vmatpush.msra.mxu0 %v245
  %290 = vmatpush.msra.mxu0 %v243
  %291 = vmatpush.msra.mxu0 %v241
  %292 = vmatpush.msra.mxu0 %v239
  %293 = vmatmul.f32.gmra.mxu0 %v238
  %v294 = vpop.f32.mrf.mxu0
  %v295 = vadd.f32 %v275, %v294
  %296 = vdwg.mxu0
  %297 = vmatpush.msra.mxu0 %v270
  %298 = vmatpush.msra.mxu0 %v268
  %299 = vmatpush.msra.mxu0 %v266
  %300 = vmatpush.msra.mxu0 %v264
  %301 = vmatpush.msra.mxu0 %v262
  %302 = vmatpush.msra.mxu0 %v260
  %303 = vmatpush.msra.mxu0 %v258
  %304 = vmatpush.msra.mxu0 %v256
  %305 = vmatpush.msra.mxu0 %v254
  %306 = vmatpush.msra.mxu0 %v252
  %307 = vmatpush.msra.mxu0 %v250
  %308 = vmatpush.msra.mxu0 %v248
  %309 = vmatpush.msra.mxu0 %v246
  %310 = vmatpush.msra.mxu0 %v244
  %311 = vmatpush.msra.mxu0 %v242
  %312 = vmatpush.msra.mxu0 %v240
  %313 = vmatmul.f32.gmra.mxu0 %v238
  %v314 = vpop.f32.mrf.mxu0
  %v315 = vadd.f32 %v275, %v314
  %316 = vdwg.mxu0
  %v317 = vmax.f32 %v295, 0.0
  %v318 = vmax.f32 %v315, 0.0
  %v319 = vld [vmem:[%s15] sm:$0xff]
  %v320 = vld [vmem:[%s15 + $0x8] sm:$0xff]
  %v321 = vld [vmem:[%s15 + $0x10] sm:$0xff]
  %v322 = vld [vmem:[%s15 + $0x18] sm:$0xff]
  %v323 = vld [vmem:[%s15 + $0x20] sm:$0xff]
  %v324 = vld [vmem:[%s15 + $0x28] sm:$0xff]
  %v325 = vld [vmem:[%s15 + $0x30] sm:$0xff]
  %v326 = vld [vmem:[%s15 + $0x38] sm:$0xff]
  %v327 = vld [vmem:[%s15 + $0x40] sm:$0xff]
  %v328 = vld [vmem:[%s15 + $0x48] sm:$0xff]
  %v329 = vld [vmem:[%s15 + $0x50] sm:$0xff]
  %v330 = vld [vmem:[%s15 + $0x58] sm:$0xff]
  %v331 = vld [vmem:[%s15 + $0x60] sm:$0xff]
  %v332 = vld [vmem:[%s15 + $0x68] sm:$0xff]
  %v333 = vld [vmem:[%s15 + $0x70] sm:$0xff]
  %v334 = vld [vmem:[%s15 + $0x78] sm:$0xff]
  %v335 = vld [vmem:[%s15 + $0x80] sm:$0xff]
  %v336 = vld [vmem:[%s15 + $0x88] sm:$0x7f]
  %v338 = vsel %vm65, %v318, 0
  %vm340 = vcmask 1046528
  %v342 = vsel %vm340, %v336, 0
  %344 = vmatpush.msra.mxu0 %v334
  %345 = vmatpush.msra.mxu0 %v333
  %346 = vmatpush.msra.mxu0 %v332
  %347 = vmatpush.msra.mxu0 %v331
  %348 = vmatpush.msra.mxu0 %v330
  %349 = vmatpush.msra.mxu0 %v329
  %350 = vmatpush.msra.mxu0 %v328
  %351 = vmatpush.msra.mxu0 %v327
  %352 = vmatpush.msra.mxu0 %v326
  %353 = vmatpush.msra.mxu0 %v325
  %354 = vmatpush.msra.mxu0 %v324
  %355 = vmatpush.msra.mxu0 %v323
  %356 = vmatpush.msra.mxu0 %v322
  %357 = vmatpush.msra.mxu0 %v321
  %358 = vmatpush.msra.mxu0 %v320
  %359 = vmatpush.msra.mxu0 %v319
  %360 = vmatmul.f32.gmra.mxu0 %v317
  %v361 = vpop.f32.mrf.mxu0
  %v362 = vadd.f32 0.0, %v361
  %363 = vdwg.mxu0
  %364 = vmatpush.msra.mxu0 0.0
  %365 = vmatpush.msra.mxu0 0.0
  %366 = vmatpush.msra.mxu0 0.0
  %367 = vmatpush.msra.mxu0 0.0
  %368 = vmatpush.msra.mxu0 0.0
  %369 = vmatpush.msra.mxu0 0.0
  %370 = vmatpush.msra.mxu0 0.0
  %371 = vmatpush.msra.mxu0 0.0
  %372 = vmatpush.msra.mxu0 0.0
  %373 = vmatpush.msra.mxu0 0.0
  %374 = vmatpush.msra.mxu0 0.0
  %375 = vmatpush.msra.mxu0 0.0
  %376 = vmatpush.msra.mxu0 0.0
  %377 = vmatpush.msra.mxu0 0.0
  %378 = vmatpush.msra.mxu0 %v342
  %379 = vmatpush.msra.mxu0 %v335
  %380 = vmatmul.f32.gmra.mxu0 %v338
  %v381 = vpop.f32.mrf.mxu0
  %v382 = vadd.f32 %v362, %v381
  %383 = vdwg.mxu0
  %s384 = scalar_lea.vmem %s15, 144
  %v385 = vld [vmem:[%s384] sm:$0xff]
  %v386 = vld [vmem:[%s384 + $0x8] sm:$0xff]
  %v387 = vld [vmem:[%s384 + $0x10] sm:$0xff]
  %v388 = vld [vmem:[%s384 + $0x18] sm:$0xff]
  %v389 = vld [vmem:[%s384 + $0x20] sm:$0xff]
  %v390 = vld [vmem:[%s384 + $0x28] sm:$0xff]
  %v391 = vld [vmem:[%s384 + $0x30] sm:$0xff]
  %v392 = vld [vmem:[%s384 + $0x38] sm:$0xff]
  %v393 = vld [vmem:[%s384 + $0x40] sm:$0xff]
  %v394 = vld [vmem:[%s384 + $0x48] sm:$0xff]
  %v395 = vld [vmem:[%s384 + $0x50] sm:$0xff]
  %v396 = vld [vmem:[%s384 + $0x58] sm:$0xff]
  %v397 = vld [vmem:[%s384 + $0x60] sm:$0xff]
  %v398 = vld [vmem:[%s384 + $0x68] sm:$0xff]
  %v399 = vld [vmem:[%s384 + $0x70] sm:$0xff]
  %v400 = vld [vmem:[%s384 + $0x78] sm:$0xff]
  %v401 = vld [vmem:[%s384 + $0x80] sm:$0xff]
  %v402 = vld [vmem:[%s384 + $0x88] sm:$0x7f]
  %v404 = vsel %vm340, %v402, 0
  %406 = vmatpush.msra.mxu0 %v400
  %407 = vmatpush.msra.mxu0 %v399
  %408 = vmatpush.msra.mxu0 %v398
  %409 = vmatpush.msra.mxu0 %v397
  %410 = vmatpush.msra.mxu0 %v396
  %411 = vmatpush.msra.mxu0 %v395
  %412 = vmatpush.msra.mxu0 %v394
  %413 = vmatpush.msra.mxu0 %v393
  %414 = vmatpush.msra.mxu0 %v392
  %415 = vmatpush.msra.mxu0 %v391
  %416 = vmatpush.msra.mxu0 %v390
  %417 = vmatpush.msra.mxu0 %v389
  %418 = vmatpush.msra.mxu0 %v388
  %419 = vmatpush.msra.mxu0 %v387
  %420 = vmatpush.msra.mxu0 %v386
  %421 = vmatpush.msra.mxu0 %v385
  %422 = vmatmul.f32.gmra.mxu0 %v317
  %v423 = vpop.f32.mrf.mxu0
  %v424 = vadd.f32 0.0, %v423
  %425 = vdwg.mxu0
  %426 = vmatpush.msra.mxu0 0.0
  %427 = vmatpush.msra.mxu0 0.0
  %428 = vmatpush.msra.mxu0 0.0
  %429 = vmatpush.msra.mxu0 0.0
  %430 = vmatpush.msra.mxu0 0.0
  %431 = vmatpush.msra.mxu0 0.0
  %432 = vmatpush.msra.mxu0 0.0
  %433 = vmatpush.msra.mxu0 0.0
  %434 = vmatpush.msra.mxu0 0.0
  %435 = vmatpush.msra.mxu0 0.0
  %436 = vmatpush.msra.mxu0 0.0
  %437 = vmatpush.msra.mxu0 0.0
  %438 = vmatpush.msra.mxu0 0.0
  %439 = vmatpush.msra.mxu0 0.0
  %440 = vmatpush.msra.mxu0 %v404
  %441 = vmatpush.msra.mxu0 %v401
  %442 = vmatmul.f32.gmra.mxu0 %v338
  %v443 = vpop.f32.mrf.mxu0
  %v444 = vadd.f32 %v424, %v443
  %445 = vdwg.mxu0
  %s446 = scalar_lea.vmem %s15, 288
  %v447 = vld [vmem:[%s446] sm:$0xff]
  %v448 = vld [vmem:[%s446 + $0x8] sm:$0xff]
  %v449 = vld [vmem:[%s446 + $0x10] sm:$0xff]
  %v450 = vld [vmem:[%s446 + $0x18] sm:$0xff]
  %v451 = vld [vmem:[%s446 + $0x20] sm:$0xff]
  %v452 = vld [vmem:[%s446 + $0x28] sm:$0xff]
  %v453 = vld [vmem:[%s446 + $0x30] sm:$0xff]
  %v454 = vld [vmem:[%s446 + $0x38] sm:$0xff]
  %v455 = vld [vmem:[%s446 + $0x40] sm:$0xff]
  %v456 = vld [vmem:[%s446 + $0x48] sm:$0xff]
  %v457 = vld [vmem:[%s446 + $0x50] sm:$0xff]
  %v458 = vld [vmem:[%s446 + $0x58] sm:$0xff]
  %v459 = vld [vmem:[%s446 + $0x60] sm:$0xff]
  %v460 = vld [vmem:[%s446 + $0x68] sm:$0xff]
  %v461 = vld [vmem:[%s446 + $0x70] sm:$0xff]
  %v462 = vld [vmem:[%s446 + $0x78] sm:$0xff]
  %v463 = vld [vmem:[%s446 + $0x80] sm:$0xff]
  %v464 = vld [vmem:[%s446 + $0x88] sm:$0x7f]
  %v466 = vsel %vm340, %v464, 0
  %468 = vmatpush.msra.mxu0 %v462
  %469 = vmatpush.msra.mxu0 %v461
  %470 = vmatpush.msra.mxu0 %v460
  %471 = vmatpush.msra.mxu0 %v459
  %472 = vmatpush.msra.mxu0 %v458
  %473 = vmatpush.msra.mxu0 %v457
  %474 = vmatpush.msra.mxu0 %v456
  %475 = vmatpush.msra.mxu0 %v455
  %476 = vmatpush.msra.mxu0 %v454
  %477 = vmatpush.msra.mxu0 %v453
  %478 = vmatpush.msra.mxu0 %v452
  %479 = vmatpush.msra.mxu0 %v451
  %480 = vmatpush.msra.mxu0 %v450
  %481 = vmatpush.msra.mxu0 %v449
  %482 = vmatpush.msra.mxu0 %v448
  %483 = vmatpush.msra.mxu0 %v447
  %484 = vmatmul.f32.gmra.mxu0 %v317
  %v485 = vpop.f32.mrf.mxu0
  %v486 = vadd.f32 0.0, %v485
  %487 = vdwg.mxu0
  %488 = vmatpush.msra.mxu0 0.0
  %489 = vmatpush.msra.mxu0 0.0
  %490 = vmatpush.msra.mxu0 0.0
  %491 = vmatpush.msra.mxu0 0.0
  %492 = vmatpush.msra.mxu0 0.0
  %493 = vmatpush.msra.mxu0 0.0
  %494 = vmatpush.msra.mxu0 0.0
  %495 = vmatpush.msra.mxu0 0.0
  %496 = vmatpush.msra.mxu0 0.0
  %497 = vmatpush.msra.mxu0 0.0
  %498 = vmatpush.msra.mxu0 0.0
  %499 = vmatpush.msra.mxu0 0.0
  %500 = vmatpush.msra.mxu0 0.0
  %501 = vmatpush.msra.mxu0 0.0
  %502 = vmatpush.msra.mxu0 %v466
  %503 = vmatpush.msra.mxu0 %v463
  %504 = vmatmul.f32.gmra.mxu0 %v338
  %v505 = vpop.f32.mrf.mxu0
  %v506 = vadd.f32 %v486, %v505
  %507 = vdwg.mxu0
  %s508 = scalar_lea.vmem %s15, 432
  %v509 = vld [vmem:[%s508] sm:$0xff]
  %v510 = vld [vmem:[%s508 + $0x8] sm:$0xff]
  %v511 = vld [vmem:[%s508 + $0x10] sm:$0xff]
  %v512 = vld [vmem:[%s508 + $0x18] sm:$0xff]
  %v513 = vld [vmem:[%s508 + $0x20] sm:$0xff]
  %v514 = vld [vmem:[%s508 + $0x28] sm:$0xff]
  %v515 = vld [vmem:[%s508 + $0x30] sm:$0xff]
  %v516 = vld [vmem:[%s508 + $0x38] sm:$0xff]
  %v517 = vld [vmem:[%s508 + $0x40] sm:$0xff]
  %v518 = vld [vmem:[%s508 + $0x48] sm:$0xff]
  %v519 = vld [vmem:[%s508 + $0x50] sm:$0xff]
  %v520 = vld [vmem:[%s508 + $0x58] sm:$0xff]
  %v521 = vld [vmem:[%s508 + $0x60] sm:$0xff]
  %v522 = vld [vmem:[%s508 + $0x68] sm:$0xff]
  %v523 = vld [vmem:[%s508 + $0x70] sm:$0xff]
  %v524 = vld [vmem:[%s508 + $0x78] sm:$0xff]
  %v525 = vld [vmem:[%s508 + $0x80] sm:$0xff]
  %v526 = vld [vmem:[%s508 + $0x88] sm:$0x7f]
  %v528 = vsel %vm340, %v526, 0
  %530 = vmatpush.msra.mxu0 %v524
  %531 = vmatpush.msra.mxu0 %v523
  %532 = vmatpush.msra.mxu0 %v522
  %533 = vmatpush.msra.mxu0 %v521
  %534 = vmatpush.msra.mxu0 %v520
  %535 = vmatpush.msra.mxu0 %v519
  %536 = vmatpush.msra.mxu0 %v518
  %537 = vmatpush.msra.mxu0 %v517
  %538 = vmatpush.msra.mxu0 %v516
  %539 = vmatpush.msra.mxu0 %v515
  %540 = vmatpush.msra.mxu0 %v514
  %541 = vmatpush.msra.mxu0 %v513
  %542 = vmatpush.msra.mxu0 %v512
  %543 = vmatpush.msra.mxu0 %v511
  %544 = vmatpush.msra.mxu0 %v510
  %545 = vmatpush.msra.mxu0 %v509
  %546 = vmatmul.f32.gmra.mxu0 %v317
  %v547 = vpop.f32.mrf.mxu0
  %v548 = vadd.f32 0.0, %v547
  %549 = vdwg.mxu0
  %550 = vmatpush.msra.mxu0 0.0
  %551 = vmatpush.msra.mxu0 0.0
  %552 = vmatpush.msra.mxu0 0.0
  %553 = vmatpush.msra.mxu0 0.0
  %554 = vmatpush.msra.mxu0 0.0
  %555 = vmatpush.msra.mxu0 0.0
  %556 = vmatpush.msra.mxu0 0.0
  %557 = vmatpush.msra.mxu0 0.0
  %558 = vmatpush.msra.mxu0 0.0
  %559 = vmatpush.msra.mxu0 0.0
  %560 = vmatpush.msra.mxu0 0.0
  %561 = vmatpush.msra.mxu0 0.0
  %562 = vmatpush.msra.mxu0 0.0
  %563 = vmatpush.msra.mxu0 0.0
  %564 = vmatpush.msra.mxu0 %v528
  %565 = vmatpush.msra.mxu0 %v525
  %566 = vmatmul.f32.gmra.mxu0 %v338
  %v567 = vpop.f32.mrf.mxu0
  %v568 = vadd.f32 %v548, %v567
  %569 = vdwg.mxu0
  %vm570 = vcmask 318464
  %571 = vst.msk [vmem:[#allocation3] sm:$0xff] %vm570, %v382
  %572 = vst.msk [vmem:[#allocation3 + $0x8] sm:$0xff] %vm570, %v444
  %574 = vrot.lane.b32.xlu0 %v382, 127
  %v575 = vpop.permute.xlu0 %574
  %577 = vst.msk [vmem:[#allocation3 + $0x10] sm:$0xff] %vm570, %v575
  %579 = vrot.lane.b32.xlu0 %v444, 127
  %v580 = vpop.permute.xlu0 %579
  %582 = vst.msk [vmem:[#allocation3 + $0x18] sm:$0xff] %vm570, %v580
  %583 = vst.msk [vmem:[#allocation3 + $0x20] sm:$0xff] %vm570, %v506
  %584 = vst.msk [vmem:[#allocation3 + $0x28] sm:$0xff] %vm570, %v568
  %586 = vrot.lane.b32.xlu0 %v506, 127
  %v587 = vpop.permute.xlu0 %586
  %589 = vst.msk [vmem:[#allocation3 + $0x30] sm:$0xff] %vm570, %v587
  %591 = vrot.lane.b32.xlu0 %v568, 127
  %v592 = vpop.permute.xlu0 %591
  %594 = vst.msk [vmem:[#allocation3 + $0x38] sm:$0xff] %vm570, %v592
  %595 = vrot.lane.b32.xlu0 %v382, 118
  %v596 = vpop.permute.xlu0 %595
  %598 = vst.msk [vmem:[#allocation3 + $0x40] sm:$0xff] %vm570, %v596
  %599 = vrot.lane.b32.xlu0 %v444, 118
  %v600 = vpop.permute.xlu0 %599
  %602 = vst.msk [vmem:[#allocation3 + $0x48] sm:$0xff] %vm570, %v600
  %603 = vrot.lane.b32.xlu0 %v382, 117
  %v604 = vpop.permute.xlu0 %603
  %606 = vst.msk [vmem:[#allocation3 + $0x50] sm:$0xff] %vm570, %v604
  %607 = vrot.lane.b32.xlu0 %v444, 117
  %v608 = vpop.permute.xlu0 %607
  %610 = vst.msk [vmem:[#allocation3 + $0x58] sm:$0xff] %vm570, %v608
  %611 = vrot.lane.b32.xlu0 %v506, 118
  %v612 = vpop.permute.xlu0 %611
  %614 = vst.msk [vmem:[#allocation3 + $0x60] sm:$0xff] %vm570, %v612
  %615 = vrot.lane.b32.xlu0 %v568, 118
  %v616 = vpop.permute.xlu0 %615
  %618 = vst.msk [vmem:[#allocation3 + $0x68] sm:$0xff] %vm570, %v616
  %619 = vrot.lane.b32.xlu0 %v506, 117
  %v620 = vpop.permute.xlu0 %619
  %622 = vst.msk [vmem:[#allocation3 + $0x70] sm:$0xff] %vm570, %v620
  %623 = vrot.lane.b32.xlu0 %v568, 117
  %v624 = vpop.permute.xlu0 %623
  %626 = vst.msk [vmem:[#allocation3 + $0x78] sm:$0xff] %vm570, %v624
  %v627 = vld [vmem:[%s3] sm:$0xff]
  %v628 = vld [vmem:[%s3 + $0x8] sm:$0xff]
  %v629 = vld [vmem:[#allocation3] sm:$0xff]
  %v630 = vld [vmem:[#allocation3 + $0x8] sm:$0xff]
  %v631 = vld [vmem:[#allocation3 + $0x10] sm:$0xff]
  %v632 = vld [vmem:[#allocation3 + $0x18] sm:$0xff]
  %v633 = vld [vmem:[#allocation3 + $0x20] sm:$0xff]
  %v634 = vld [vmem:[#allocation3 + $0x28] sm:$0xff]
  %v635 = vld [vmem:[#allocation3 + $0x30] sm:$0xff]
  %v636 = vld [vmem:[#allocation3 + $0x38] sm:$0xff]
  %v637 = vld [vmem:[#allocation3 + $0x40] sm:$0xff]
  %v638 = vld [vmem:[#allocation3 + $0x48] sm:$0xff]
  %v639 = vld [vmem:[#allocation3 + $0x50] sm:$0xff]
  %v640 = vld [vmem:[#allocation3 + $0x58] sm:$0xff]
  %v641 = vld [vmem:[#allocation3 + $0x60] sm:$0xff]
  %v642 = vld [vmem:[#allocation3 + $0x68] sm:$0xff]
  %v643 = vld [vmem:[#allocation3 + $0x70] sm:$0xff]
  %v644 = vld [vmem:[#allocation3 + $0x78] sm:$0xff]
  %v645 = vld [vmem:[%s4] sm:$0xff]
  %v646 = vld [vmem:[%s4 + $0x8] sm:$0xff]
  %648 = vset.pattern.permute.xlu0 0
  %649 = vperm.xlu0 %648, %v645
  %v650 = vpop.permute.xlu0 %649
  %653 = vset.pattern.permute.xlu0 0
  %654 = vperm.xlu0 %653, %v646
  %v655 = vpop.permute.xlu0 %654
  %657 = vmatpush.msra.mxu0 %v644
  %658 = vmatpush.msra.mxu0 %v643
  %659 = vmatpush.msra.mxu0 %v642
  %660 = vmatpush.msra.mxu0 %v641
  %661 = vmatpush.msra.mxu0 %v640
  %662 = vmatpush.msra.mxu0 %v639
  %663 = vmatpush.msra.mxu0 %v638
  %664 = vmatpush.msra.mxu0 %v637
  %665 = vmatpush.msra.mxu0 %v636
  %666 = vmatpush.msra.mxu0 %v635
  %667 = vmatpush.msra.mxu0 %v634
  %668 = vmatpush.msra.mxu0 %v633
  %669 = vmatpush.msra.mxu0 %v632
  %670 = vmatpush.msra.mxu0 %v631
  %671 = vmatpush.msra.mxu0 %v630
  %672 = vmatpush.msra.mxu0 %v629
  %673 = vmatmul.f32.gmra.mxu0 %v627
  %v674 = vpop.f32.mrf.mxu0
  %v675 = vadd.f32 %v650, %v674
  %676 = vmatmul.f32.gmra.mxu0 %v628
  %v677 = vpop.f32.mrf.mxu0
  %v678 = vadd.f32 %v655, %v677
  %679 = vdwg.mxu0
  %v680 = vmax.f32 %v675, 0.0
  %v681 = vmax.f32 %v678, 0.0
  %v682 = vld [vmem:[%s16] sm:$0xff]
  %v683 = vld [vmem:[%s16 + $0x8] sm:$0xff]
  %v684 = vld [vmem:[%s16 + $0x10] sm:$0xff]
  %v685 = vld [vmem:[%s16 + $0x18] sm:$0xff]
  %v686 = vld [vmem:[%s16 + $0x20] sm:$0x7f]
  %v688 = vsel %vm570, %v680, 0
  %v691 = vsel %vm570, %v681, 0
  %v694 = vsel %vm340, %v686, 0
  %696 = vmatpush.msra.mxu0 0.0
  %697 = vmatpush.msra.mxu0 0.0
  %698 = vmatpush.msra.mxu0 0.0
  %699 = vmatpush.msra.mxu0 0.0
  %700 = vmatpush.msra.mxu0 0.0
  %701 = vmatpush.msra.mxu0 0.0
  %702 = vmatpush.msra.mxu0 0.0
  %703 = vmatpush.msra.mxu0 0.0
  %704 = vmatpush.msra.mxu0 0.0
  %705 = vmatpush.msra.mxu0 0.0
  %706 = vmatpush.msra.mxu0 0.0
  %707 = vmatpush.msra.mxu0 %v694
  %708 = vmatpush.msra.mxu0 %v685
  %709 = vmatpush.msra.mxu0 %v684
  %710 = vmatpush.msra.mxu0 %v683
  %711 = vmatpush.msra.mxu0 %v682
  %712 = vmatmul.f32.gmra.mxu0 %v688
  %v713 = vpop.f32.mrf.mxu0
  %v714 = vadd.f32 0.0, %v713
  %715 = vmatmul.f32.gmra.mxu0 %v691
  %v716 = vpop.f32.mrf.mxu0
  %v717 = vadd.f32 0.0, %v716
  %718 = vdwg.mxu0
  %vm719 = vcmask 375808
  %720 = vst.msk [vmem:[#allocation4] sm:$0xff] %vm719, %v714
  %721 = vst.msk [vmem:[#allocation4 + $0x8] sm:$0xff] %vm719, %v717
  %724 = vrot.lane.b32.xlu0 %v714, 127
  %v725 = vpop.permute.xlu0 %724
  %726 = vrot.lane.b32.xlu0 %v717, 127
  %v727 = vpop.permute.xlu0 %726
  %730 = vst.msk [vmem:[#allocation4 + $0x10] sm:$0xff] %vm719, %v725
  %731 = vst.msk [vmem:[#allocation4 + $0x18] sm:$0xff] %vm719, %v727
  %732 = vrot.lane.b32.xlu0 %v714, 126
  %v733 = vpop.permute.xlu0 %732
  %734 = vrot.lane.b32.xlu0 %v717, 126
  %v735 = vpop.permute.xlu0 %734
  %738 = vst.msk [vmem:[#allocation4 + $0x20] sm:$0xff] %vm719, %v733
  %739 = vst.msk [vmem:[#allocation4 + $0x28] sm:$0xff] %vm719, %v735
  %740 = vrot.lane.b32.xlu0 %v714, 116
  %v741 = vpop.permute.xlu0 %740
  %742 = vrot.lane.b32.xlu0 %v717, 116
  %v743 = vpop.permute.xlu0 %742
  %746 = vst.msk [vmem:[#allocation4 + $0x30] sm:$0xff] %vm719, %v741
  %747 = vst.msk [vmem:[#allocation4 + $0x38] sm:$0xff] %vm719, %v743
  %748 = vrot.lane.b32.xlu0 %v714, 115
  %v749 = vpop.permute.xlu0 %748
  %750 = vrot.lane.b32.xlu0 %v717, 115
  %v751 = vpop.permute.xlu0 %750
  %754 = vst.msk [vmem:[#allocation4 + $0x40] sm:$0xff] %vm719, %v749
  %755 = vst.msk [vmem:[#allocation4 + $0x48] sm:$0xff] %vm719, %v751
  %756 = vrot.lane.b32.xlu0 %v714, 114
  %v757 = vpop.permute.xlu0 %756
  %758 = vrot.lane.b32.xlu0 %v717, 114
  %v759 = vpop.permute.xlu0 %758
  %762 = vst.msk [vmem:[#allocation4 + $0x50] sm:$0xff] %vm719, %v757
  %763 = vst.msk [vmem:[#allocation4 + $0x58] sm:$0xff] %vm719, %v759
  %764 = vrot.lane.b32.xlu0 %v714, 104
  %v765 = vpop.permute.xlu0 %764
  %766 = vrot.lane.b32.xlu0 %v717, 104
  %v767 = vpop.permute.xlu0 %766
  %770 = vst.msk [vmem:[#allocation4 + $0x60] sm:$0xff] %vm719, %v765
  %771 = vst.msk [vmem:[#allocation4 + $0x68] sm:$0xff] %vm719, %v767
  %772 = vrot.lane.b32.xlu0 %v714, 103
  %v773 = vpop.permute.xlu0 %772
  %774 = vrot.lane.b32.xlu0 %v717, 103
  %v775 = vpop.permute.xlu0 %774
  %778 = vst.msk [vmem:[#allocation4 + $0x70] sm:$0xff] %vm719, %v773
  %779 = vst.msk [vmem:[#allocation4 + $0x78] sm:$0xff] %vm719, %v775
  %780 = vrot.lane.b32.xlu0 %v714, 102
  %v781 = vpop.permute.xlu0 %780
  %782 = vrot.lane.b32.xlu0 %v717, 102
  %v783 = vpop.permute.xlu0 %782
  %786 = vst.msk [vmem:[#allocation4 + $0x80] sm:$0xff] %vm719, %v781
  %787 = vst.msk [vmem:[#allocation4 + $0x88] sm:$0xff] %vm719, %v783
  %v788 = vld [vmem:[%s5] sm:$0xff]
  %v789 = vld [vmem:[%s5 + $0x8] sm:$0xff]
  %v790 = vld [vmem:[%s5 + $0x10] sm:$0xff]
  %v791 = vld [vmem:[%s5 + $0x18] sm:$0xff]
  %v792 = vld [vmem:[#allocation4] sm:$0xff]
  %v793 = vld [vmem:[#allocation4 + $0x8] sm:$0xff]
  %v794 = vld [vmem:[#allocation4 + $0x10] sm:$0xff]
  %v795 = vld [vmem:[#allocation4 + $0x18] sm:$0xff]
  %v796 = vld [vmem:[#allocation4 + $0x20] sm:$0xff]
  %v797 = vld [vmem:[#allocation4 + $0x28] sm:$0xff]
  %v798 = vld [vmem:[#allocation4 + $0x30] sm:$0xff]
  %v799 = vld [vmem:[#allocation4 + $0x38] sm:$0xff]
  %v800 = vld [vmem:[#allocation4 + $0x40] sm:$0xff]
  %v801 = vld [vmem:[#allocation4 + $0x48] sm:$0xff]
  %v802 = vld [vmem:[#allocation4 + $0x50] sm:$0xff]
  %v803 = vld [vmem:[#allocation4 + $0x58] sm:$0xff]
  %v804 = vld [vmem:[#allocation4 + $0x60] sm:$0xff]
  %v805 = vld [vmem:[#allocation4 + $0x68] sm:$0xff]
  %v806 = vld [vmem:[#allocation4 + $0x70] sm:$0xff]
  %v807 = vld [vmem:[#allocation4 + $0x78] sm:$0xff]
  %v808 = vld [vmem:[#allocation4 + $0x80] sm:$0xff]
  %v809 = vld [vmem:[#allocation4 + $0x88] sm:$0xff]
  %v810 = vld [vmem:[%s6] sm:$0xff]
  %v811 = vld [vmem:[%s6 + $0x8] sm:$0xff]
  %813 = vset.pattern.permute.xlu0 0
  %814 = vperm.xlu0 %813, %v810
  %v815 = vpop.permute.xlu0 %814
  %818 = vset.pattern.permute.xlu0 0
  %819 = vperm.xlu0 %818, %v811
  %v820 = vpop.permute.xlu0 %819
  %vm822 = vcmask 130048
  %v824 = vsel %vm822, %v789, 0
  %v827 = vsel %vm822, %v791, 0
  %829 = vmatpush.msra.mxu0 %v807
  %830 = vmatpush.msra.mxu0 %v806
  %831 = vmatpush.msra.mxu0 %v805
  %832 = vmatpush.msra.mxu0 %v804
  %833 = vmatpush.msra.mxu0 %v803
  %834 = vmatpush.msra.mxu0 %v802
  %835 = vmatpush.msra.mxu0 %v801
  %836 = vmatpush.msra.mxu0 %v800
  %837 = vmatpush.msra.mxu0 %v799
  %838 = vmatpush.msra.mxu0 %v798
  %839 = vmatpush.msra.mxu0 %v797
  %840 = vmatpush.msra.mxu0 %v796
  %841 = vmatpush.msra.mxu0 %v795
  %842 = vmatpush.msra.mxu0 %v794
  %843 = vmatpush.msra.mxu0 %v793
  %844 = vmatpush.msra.mxu0 %v792
  %845 = vmatmul.f32.gmra.mxu0 %v788
  %v846 = vpop.f32.mrf.mxu0
  %v847 = vadd.f32 %v815, %v846
  %848 = vmatmul.f32.gmra.mxu0 %v790
  %v849 = vpop.f32.mrf.mxu0
  %v850 = vadd.f32 %v820, %v849
  %851 = vdwg.mxu0
  %852 = vmatpush.msra.mxu0 0.0
  %853 = vmatpush.msra.mxu0 0.0
  %854 = vmatpush.msra.mxu0 0.0
  %855 = vmatpush.msra.mxu0 0.0
  %856 = vmatpush.msra.mxu0 0.0
  %857 = vmatpush.msra.mxu0 0.0
  %858 = vmatpush.msra.mxu0 0.0
  %859 = vmatpush.msra.mxu0 0.0
  %860 = vmatpush.msra.mxu0 0.0
  %861 = vmatpush.msra.mxu0 0.0
  %862 = vmatpush.msra.mxu0 0.0
  %863 = vmatpush.msra.mxu0 0.0
  %864 = vmatpush.msra.mxu0 0.0
  %865 = vmatpush.msra.mxu0 0.0
  %866 = vmatpush.msra.mxu0 %v809
  %867 = vmatpush.msra.mxu0 %v808
  %868 = vmatmul.f32.gmra.mxu0 %v824
  %v869 = vpop.f32.mrf.mxu0
  %v870 = vadd.f32 %v847, %v869
  %871 = vmatmul.f32.gmra.mxu0 %v827
  %v872 = vpop.f32.mrf.mxu0
  %v873 = vadd.f32 %v850, %v872
  %874 = vdwg.mxu0
  %v875 = vld [vmem:[%s17] sm:$0xff]
  %v876 = vld [vmem:[%s17 + $0x8] sm:$0xff]
  %v877 = vld [vmem:[%s17 + $0x10] sm:$0xff]
  %v878 = vld [vmem:[%s17 + $0x18] sm:$0xff]
  %v879 = vld [vmem:[%s17 + $0x20] sm:$0xff]
  %v880 = vld [vmem:[%s17 + $0x28] sm:$0x3f]
  %v882 = vsel %vm719, %v870, 0
  %v885 = vsel %vm719, %v873, 0
  %vm887 = vcmask 1045504
  %v889 = vsel %vm887, %v880, 0
  %891 = vmatpush.msra.mxu0 0.0
  %892 = vmatpush.msra.mxu0 0.0
  %893 = vmatpush.msra.mxu0 0.0
  %894 = vmatpush.msra.mxu0 0.0
  %895 = vmatpush.msra.mxu0 0.0
  %896 = vmatpush.msra.mxu0 0.0
  %897 = vmatpush.msra.mxu0 0.0
  %898 = vmatpush.msra.mxu0 0.0
  %899 = vmatpush.msra.mxu0 0.0
  %900 = vmatpush.msra.mxu0 0.0
  %901 = vmatpush.msra.mxu0 %v889
  %902 = vmatpush.msra.mxu0 %v879
  %903 = vmatpush.msra.mxu0 %v878
  %904 = vmatpush.msra.mxu0 %v877
  %905 = vmatpush.msra.mxu0 %v876
  %906 = vmatpush.msra.mxu0 %v875
  %907 = vmatmul.f32.gmra.mxu0 %v882
  %v908 = vpop.f32.mrf.mxu0
  %v909 = vadd.f32 0.0, %v908
  %910 = vmatmul.f32.gmra.mxu0 %v885
  %v911 = vpop.f32.mrf.mxu0
  %v912 = vadd.f32 0.0, %v911
  %913 = vdwg.mxu0
  %v914 = vmax.f32 %v909, 0.0
  %v915 = vmax.f32 %v912, 0.0
  %916 = vst.msk [vmem:[#allocation4] sm:$0xff] %vm719, %v914
  %917 = vst.msk [vmem:[#allocation4 + $0x8] sm:$0xff] %vm719, %v915
  %920 = vrot.lane.b32.xlu0 %v914, 127
  %v921 = vpop.permute.xlu0 %920
  %922 = vrot.lane.b32.xlu0 %v915, 127
  %v923 = vpop.permute.xlu0 %922
  %926 = vst.msk [vmem:[#allocation4 + $0x10] sm:$0xff] %vm719, %v921
  %927 = vst.msk [vmem:[#allocation4 + $0x18] sm:$0xff] %vm719, %v923
  %928 = vrot.lane.b32.xlu0 %v914, 126
  %v929 = vpop.permute.xlu0 %928
  %930 = vrot.lane.b32.xlu0 %v915, 126
  %v931 = vpop.permute.xlu0 %930
  %934 = vst.msk [vmem:[#allocation4 + $0x20] sm:$0xff] %vm719, %v929
  %935 = vst.msk [vmem:[#allocation4 + $0x28] sm:$0xff] %vm719, %v931
  %936 = vrot.lane.b32.xlu0 %v914, 116
  %v937 = vpop.permute.xlu0 %936
  %938 = vrot.lane.b32.xlu0 %v915, 116
  %v939 = vpop.permute.xlu0 %938
  %942 = vst.msk [vmem:[#allocation4 + $0x30] sm:$0xff] %vm719, %v937
  %943 = vst.msk [vmem:[#allocation4 + $0x38] sm:$0xff] %vm719, %v939
  %944 = vrot.lane.b32.xlu0 %v914, 115
  %v945 = vpop.permute.xlu0 %944
  %946 = vrot.lane.b32.xlu0 %v915, 115
  %v947 = vpop.permute.xlu0 %946
  %950 = vst.msk [vmem:[#allocation4 + $0x40] sm:$0xff] %vm719, %v945
  %951 = vst.msk [vmem:[#allocation4 + $0x48] sm:$0xff] %vm719, %v947
  %952 = vrot.lane.b32.xlu0 %v914, 114
  %v953 = vpop.permute.xlu0 %952
  %954 = vrot.lane.b32.xlu0 %v915, 114
  %v955 = vpop.permute.xlu0 %954
  %958 = vst.msk [vmem:[#allocation4 + $0x50] sm:$0xff] %vm719, %v953
  %959 = vst.msk [vmem:[#allocation4 + $0x58] sm:$0xff] %vm719, %v955
  %960 = vrot.lane.b32.xlu0 %v914, 104
  %v961 = vpop.permute.xlu0 %960
  %962 = vrot.lane.b32.xlu0 %v915, 104
  %v963 = vpop.permute.xlu0 %962
  %966 = vst.msk [vmem:[#allocation4 + $0x60] sm:$0xff] %vm719, %v961
  %967 = vst.msk [vmem:[#allocation4 + $0x68] sm:$0xff] %vm719, %v963
  %968 = vrot.lane.b32.xlu0 %v914, 103
  %v969 = vpop.permute.xlu0 %968
  %970 = vrot.lane.b32.xlu0 %v915, 103
  %v971 = vpop.permute.xlu0 %970
  %974 = vst.msk [vmem:[#allocation4 + $0x70] sm:$0xff] %vm719, %v969
  %975 = vst.msk [vmem:[#allocation4 + $0x78] sm:$0xff] %vm719, %v971
  %976 = vrot.lane.b32.xlu0 %v914, 102
  %v977 = vpop.permute.xlu0 %976
  %978 = vrot.lane.b32.xlu0 %v915, 102
  %v979 = vpop.permute.xlu0 %978
  %982 = vst.msk [vmem:[#allocation4 + $0x80] sm:$0xff] %vm719, %v977
  %983 = vst.msk [vmem:[#allocation4 + $0x88] sm:$0xff] %vm719, %v979
  %v984 = vld [vmem:[%s7] sm:$0xff]
  %v985 = vld [vmem:[%s7 + $0x8] sm:$0xff]
  %v986 = vld [vmem:[#allocation4] sm:$0xff]
  %v987 = vld [vmem:[#allocation4 + $0x8] sm:$0xff]
  %v988 = vld [vmem:[#allocation4 + $0x10] sm:$0xff]
  %v989 = vld [vmem:[#allocation4 + $0x18] sm:$0xff]
  %v990 = vld [vmem:[#allocation4 + $0x20] sm:$0xff]
  %v991 = vld [vmem:[#allocation4 + $0x28] sm:$0xff]
  %v992 = vld [vmem:[#allocation4 + $0x30] sm:$0xff]
  %v993 = vld [vmem:[#allocation4 + $0x38] sm:$0xff]
  %v994 = vld [vmem:[#allocation4 + $0x40] sm:$0xff]
  %v995 = vld [vmem:[#allocation4 + $0x48] sm:$0xff]
  %v996 = vld [vmem:[#allocation4 + $0x50] sm:$0xff]
  %v997 = vld [vmem:[#allocation4 + $0x58] sm:$0xff]
  %v998 = vld [vmem:[#allocation4 + $0x60] sm:$0xff]
  %v999 = vld [vmem:[#allocation4 + $0x68] sm:$0xff]
  %v1000 = vld [vmem:[#allocation4 + $0x70] sm:$0xff]
  %v1001 = vld [vmem:[#allocation4 + $0x78] sm:$0xff]
  %v1002 = vld [vmem:[#allocation4 + $0x80] sm:$0xff]
  %v1003 = vld [vmem:[#allocation4 + $0x88] sm:$0xff]
  %v1004 = vld [vmem:[%s8] sm:$0xff]
  %1006 = vset.pattern.permute.xlu0 0
  %1007 = vperm.xlu0 %1006, %v1004
  %v1008 = vpop.permute.xlu0 %1007
  %v1011 = vsel %vm822, %v985, 0
  %1013 = vmatpush.msra.mxu0 %v1001
  %1014 = vmatpush.msra.mxu0 %v1000
  %1015 = vmatpush.msra.mxu0 %v999
  %1016 = vmatpush.msra.mxu0 %v998
  %1017 = vmatpush.msra.mxu0 %v997
  %1018 = vmatpush.msra.mxu0 %v996
  %1019 = vmatpush.msra.mxu0 %v995
  %1020 = vmatpush.msra.mxu0 %v994
  %1021 = vmatpush.msra.mxu0 %v993
  %1022 = vmatpush.msra.mxu0 %v992
  %1023 = vmatpush.msra.mxu0 %v991
  %1024 = vmatpush.msra.mxu0 %v990
  %1025 = vmatpush.msra.mxu0 %v989
  %1026 = vmatpush.msra.mxu0 %v988
  %1027 = vmatpush.msra.mxu0 %v987
  %1028 = vmatpush.msra.mxu0 %v986
  %1029 = vmatmul.f32.gmra.mxu0 %v984
  %v1030 = vpop.f32.mrf.mxu0
  %v1031 = vadd.f32 %v1008, %v1030
  %1032 = vdwg.mxu0
  %1033 = vmatpush.msra.mxu0 0.0
  %1034 = vmatpush.msra.mxu0 0.0
  %1035 = vmatpush.msra.mxu0 0.0
  %1036 = vmatpush.msra.mxu0 0.0
  %1037 = vmatpush.msra.mxu0 0.0
  %1038 = vmatpush.msra.mxu0 0.0
  %1039 = vmatpush.msra.mxu0 0.0
  %1040 = vmatpush.msra.mxu0 0.0
  %1041 = vmatpush.msra.mxu0 0.0
  %1042 = vmatpush.msra.mxu0 0.0
  %1043 = vmatpush.msra.mxu0 0.0
  %1044 = vmatpush.msra.mxu0 0.0
  %1045 = vmatpush.msra.mxu0 0.0
  %1046 = vmatpush.msra.mxu0 0.0
  %1047 = vmatpush.msra.mxu0 %v1003
  %1048 = vmatpush.msra.mxu0 %v1002
  %1049 = vmatmul.f32.gmra.mxu0 %v1011
  %v1050 = vpop.f32.mrf.mxu0
  %v1051 = vadd.f32 %v1031, %v1050
  %1052 = vdwg.mxu0
  %v1053 = vmax.f32 %v1051, 0.0
  %v1054 = vld [vmem:[%s9] sm:$0xff]
  %v1055 = vld [vmem:[%s9 + $0x8] sm:$0xff]
  %v1056 = vld [vmem:[%s10] sm:$0xff]
  %v1057 = vld [vmem:[%s10 + $0x8] sm:$0xff]
  %1059 = vset.pattern.permute.xlu0 0
  %1060 = vperm.xlu0 %1059, %v1056
  %v1061 = vpop.permute.xlu0 %1060
  %1064 = vset.pattern.permute.xlu0 0
  %1065 = vperm.xlu0 %1064, %v1057
  %v1066 = vpop.permute.xlu0 %1065
  %vm1068 = vcmask 64512
  %v1070 = vsel %vm1068, %v1054, 0
  %v1073 = vsel %vm1068, %v1055, 0
  %1075 = vmatpush.msra.mxu0 0.0
  %1076 = vmatpush.msra.mxu0 0.0
  %1077 = vmatpush.msra.mxu0 0.0
  %1078 = vmatpush.msra.mxu0 0.0
  %1079 = vmatpush.msra.mxu0 0.0
  %1080 = vmatpush.msra.mxu0 0.0
  %1081 = vmatpush.msra.mxu0 0.0
  %1082 = vmatpush.msra.mxu0 0.0
  %1083 = vmatpush.msra.mxu0 0.0
  %1084 = vmatpush.msra.mxu0 0.0
  %1085 = vmatpush.msra.mxu0 0.0
  %1086 = vmatpush.msra.mxu0 0.0
  %1087 = vmatpush.msra.mxu0 0.0
  %1088 = vmatpush.msra.mxu0 0.0
  %1089 = vmatpush.msra.mxu0 0.0
  %1090 = vmatpush.msra.mxu0 %v1053
  %1091 = vmatmul.f32.gmra.mxu0 %v1070
  %v1092 = vpop.f32.mrf.mxu0
  %v1093 = vadd.f32 %v1061, %v1092
  %1094 = vmatmul.f32.gmra.mxu0 %v1073
  %v1095 = vpop.f32.mrf.mxu0
  %v1096 = vadd.f32 %v1066, %v1095
  %1097 = vdwg.mxu0
  %1100 = vrot.lane.b32.xlu0 %v1093, 13
  %v1101 = vpop.permute.xlu0 %1100
  %1102 = vrot.lane.b32.xlu0 %v1096, 13
  %v1103 = vpop.permute.xlu0 %1102
  %v1106 = vadd.f32 %v909, %v1101
  %v1107 = vadd.f32 %v912, %v1103
  %v1108 = vld [vmem:[%s17] sm:$0xff]
  %v1109 = vld [vmem:[%s17 + $0x8] sm:$0xff]
  %v1110 = vld [vmem:[%s17 + $0x10] sm:$0xff]
  %v1111 = vld [vmem:[%s17 + $0x18] sm:$0xff]
  %v1112 = vld [vmem:[%s17 + $0x20] sm:$0xff]
  %v1113 = vld [vmem:[%s17 + $0x28] sm:$0x3f]
  %1116 = vrot.lane.b32.xlu0 %v1106, 115
  %v1117 = vpop.permute.xlu0 %1116
  %1118 = vrot.lane.b32.xlu0 %v1107, 115
  %v1119 = vpop.permute.xlu0 %1118
  %v1120 = vsel %vm719, %v1117, 0
  %v1122 = vsel %vm719, %v1119, 0
  %v1125 = vsel %vm887, %v1113, 0
  %1127 = vmatpush.msra.mxu0 0.0
  %1128 = vmatpush.msra.mxu0 0.0
  %1129 = vmatpush.msra.mxu0 0.0
  %1130 = vmatpush.msra.mxu0 0.0
  %1131 = vmatpush.msra.mxu0 0.0
  %1132 = vmatpush.msra.mxu0 0.0
  %1133 = vmatpush.msra.mxu0 0.0
  %1134 = vmatpush.msra.mxu0 0.0
  %1135 = vmatpush.msra.mxu0 0.0
  %1136 = vmatpush.msra.mxu0 0.0
  %1137 = vmatpush.msra.mxu0 %v1125
  %1138 = vmatpush.msra.mxu0 %v1112
  %1139 = vmatpush.msra.mxu0 %v1111
  %1140 = vmatpush.msra.mxu0 %v1110
  %1141 = vmatpush.msra.mxu0 %v1109
  %1142 = vmatpush.msra.mxu0 %v1108
  %1143 = vmatmul.f32.gmra.mxu0 %v1120
  %v1144 = vpop.f32.mrf.mxu0
  %v1145 = vadd.f32 0.0, %v1144
  %1146 = vmatmul.f32.gmra.mxu0 %v1122
  %v1147 = vpop.f32.mrf.mxu0
  %v1148 = vadd.f32 0.0, %v1147
  %1149 = vdwg.mxu0
  %v1150 = vmax.f32 %v1145, 0.0
  %v1151 = vmax.f32 %v1148, 0.0
  %1152 = vst.msk [vmem:[#allocation4] sm:$0xff] %vm719, %v1150
  %1153 = vst.msk [vmem:[#allocation4 + $0x8] sm:$0xff] %vm719, %v1151
  %1156 = vrot.lane.b32.xlu0 %v1150, 127
  %v1157 = vpop.permute.xlu0 %1156
  %1158 = vrot.lane.b32.xlu0 %v1151, 127
  %v1159 = vpop.permute.xlu0 %1158
  %1162 = vst.msk [vmem:[#allocation4 + $0x10] sm:$0xff] %vm719, %v1157
  %1163 = vst.msk [vmem:[#allocation4 + $0x18] sm:$0xff] %vm719, %v1159
  %1164 = vrot.lane.b32.xlu0 %v1150, 126
  %v1165 = vpop.permute.xlu0 %1164
  %1166 = vrot.lane.b32.xlu0 %v1151, 126
  %v1167 = vpop.permute.xlu0 %1166
  %1170 = vst.msk [vmem:[#allocation4 + $0x20] sm:$0xff] %vm719, %v1165
  %1171 = vst.msk [vmem:[#allocation4 + $0x28] sm:$0xff] %vm719, %v1167
  %1172 = vrot.lane.b32.xlu0 %v1150, 116
  %v1173 = vpop.permute.xlu0 %1172
  %1174 = vrot.lane.b32.xlu0 %v1151, 116
  %v1175 = vpop.permute.xlu0 %1174
  %1178 = vst.msk [vmem:[#allocation4 + $0x30] sm:$0xff] %vm719, %v1173
  %1179 = vst.msk [vmem:[#allocation4 + $0x38] sm:$0xff] %vm719, %v1175
  %1180 = vrot.lane.b32.xlu0 %v1150, 115
  %v1181 = vpop.permute.xlu0 %1180
  %1182 = vrot.lane.b32.xlu0 %v1151, 115
  %v1183 = vpop.permute.xlu0 %1182
  %1186 = vst.msk [vmem:[#allocation4 + $0x40] sm:$0xff] %vm719, %v1181
  %1187 = vst.msk [vmem:[#allocation4 + $0x48] sm:$0xff] %vm719, %v1183
  %1188 = vrot.lane.b32.xlu0 %v1150, 114
  %v1189 = vpop.permute.xlu0 %1188
  %1190 = vrot.lane.b32.xlu0 %v1151, 114
  %v1191 = vpop.permute.xlu0 %1190
  %1194 = vst.msk [vmem:[#allocation4 + $0x50] sm:$0xff] %vm719, %v1189
  %1195 = vst.msk [vmem:[#allocation4 + $0x58] sm:$0xff] %vm719, %v1191
  %1196 = vrot.lane.b32.xlu0 %v1150, 104
  %v1197 = vpop.permute.xlu0 %1196
  %1198 = vrot.lane.b32.xlu0 %v1151, 104
  %v1199 = vpop.permute.xlu0 %1198
  %1202 = vst.msk [vmem:[#allocation4 + $0x60] sm:$0xff] %vm719, %v1197
  %1203 = vst.msk [vmem:[#allocation4 + $0x68] sm:$0xff] %vm719, %v1199
  %1204 = vrot.lane.b32.xlu0 %v1150, 103
  %v1205 = vpop.permute.xlu0 %1204
  %1206 = vrot.lane.b32.xlu0 %v1151, 103
  %v1207 = vpop.permute.xlu0 %1206
  %1210 = vst.msk [vmem:[#allocation4 + $0x70] sm:$0xff] %vm719, %v1205
  %1211 = vst.msk [vmem:[#allocation4 + $0x78] sm:$0xff] %vm719, %v1207
  %1212 = vrot.lane.b32.xlu0 %v1150, 102
  %v1213 = vpop.permute.xlu0 %1212
  %1214 = vrot.lane.b32.xlu0 %v1151, 102
  %v1215 = vpop.permute.xlu0 %1214
  %1218 = vst.msk [vmem:[#allocation4 + $0x80] sm:$0xff] %vm719, %v1213
  %1219 = vst.msk [vmem:[#allocation4 + $0x88] sm:$0xff] %vm719, %v1215
  %v1220 = vld [vmem:[%s11] sm:$0xff]
  %v1221 = vld [vmem:[%s11 + $0x8] sm:$0xff]
  %v1222 = vld [vmem:[#allocation4] sm:$0xff]
  %v1223 = vld [vmem:[#allocation4 + $0x8] sm:$0xff]
  %v1224 = vld [vmem:[#allocation4 + $0x10] sm:$0xff]
  %v1225 = vld [vmem:[#allocation4 + $0x18] sm:$0xff]
  %v1226 = vld [vmem:[#allocation4 + $0x20] sm:$0xff]
  %v1227 = vld [vmem:[#allocation4 + $0x28] sm:$0xff]
  %v1228 = vld [vmem:[#allocation4 + $0x30] sm:$0xff]
  %v1229 = vld [vmem:[#allocation4 + $0x38] sm:$0xff]
  %v1230 = vld [vmem:[#allocation4 + $0x40] sm:$0xff]
  %v1231 = vld [vmem:[#allocation4 + $0x48] sm:$0xff]
  %v1232 = vld [vmem:[#allocation4 + $0x50] sm:$0xff]
  %v1233 = vld [vmem:[#allocation4 + $0x58] sm:$0xff]
  %v1234 = vld [vmem:[#allocation4 + $0x60] sm:$0xff]
  %v1235 = vld [vmem:[#allocation4 + $0x68] sm:$0xff]
  %v1236 = vld [vmem:[#allocation4 + $0x70] sm:$0xff]
  %v1237 = vld [vmem:[#allocation4 + $0x78] sm:$0xff]
  %v1238 = vld [vmem:[#allocation4 + $0x80] sm:$0xff]
  %v1239 = vld [vmem:[#allocation4 + $0x88] sm:$0xff]
  %v1240 = vld [vmem:[%s12] sm:$0xff]
  %1242 = vset.pattern.permute.xlu0 0
  %1243 = vperm.xlu0 %1242, %v1240
  %v1244 = vpop.permute.xlu0 %1243
  %v1247 = vsel %vm822, %v1221, 0
  %1249 = vmatpush.msra.mxu0 %v1237
  %1250 = vmatpush.msra.mxu0 %v1236
  %1251 = vmatpush.msra.mxu0 %v1235
  %1252 = vmatpush.msra.mxu0 %v1234
  %1253 = vmatpush.msra.mxu0 %v1233
  %1254 = vmatpush.msra.mxu0 %v1232
  %1255 = vmatpush.msra.mxu0 %v1231
  %1256 = vmatpush.msra.mxu0 %v1230
  %1257 = vmatpush.msra.mxu0 %v1229
  %1258 = vmatpush.msra.mxu0 %v1228
  %1259 = vmatpush.msra.mxu0 %v1227
  %1260 = vmatpush.msra.mxu0 %v1226
  %1261 = vmatpush.msra.mxu0 %v1225
  %1262 = vmatpush.msra.mxu0 %v1224
  %1263 = vmatpush.msra.mxu0 %v1223
  %1264 = vmatpush.msra.mxu0 %v1222
  %1265 = vmatmul.f32.gmra.mxu0 %v1220
  %v1266 = vpop.f32.mrf.mxu0
  %v1267 = vadd.f32 %v1244, %v1266
  %1268 = vdwg.mxu0
  %1269 = vmatpush.msra.mxu0 0.0
  %1270 = vmatpush.msra.mxu0 0.0
  %1271 = vmatpush.msra.mxu0 0.0
  %1272 = vmatpush.msra.mxu0 0.0
  %1273 = vmatpush.msra.mxu0 0.0
  %1274 = vmatpush.msra.mxu0 0.0
  %1275 = vmatpush.msra.mxu0 0.0
  %1276 = vmatpush.msra.mxu0 0.0
  %1277 = vmatpush.msra.mxu0 0.0
  %1278 = vmatpush.msra.mxu0 0.0
  %1279 = vmatpush.msra.mxu0 0.0
  %1280 = vmatpush.msra.mxu0 0.0
  %1281 = vmatpush.msra.mxu0 0.0
  %1282 = vmatpush.msra.mxu0 0.0
  %1283 = vmatpush.msra.mxu0 %v1239
  %1284 = vmatpush.msra.mxu0 %v1238
  %1285 = vmatmul.f32.gmra.mxu0 %v1247
  %v1286 = vpop.f32.mrf.mxu0
  %v1287 = vadd.f32 %v1267, %v1286
  %1288 = vdwg.mxu0
  %v1289 = vmax.f32 %v1287, 0.0
  %v1290 = vld [vmem:[%s13] sm:$0xff]
  %v1291 = vld [vmem:[%s13 + $0x8] sm:$0xff]
  %v1292 = vld [vmem:[%s14] sm:$0xff]
  %v1293 = vld [vmem:[%s14 + $0x8] sm:$0xff]
  %1295 = vset.pattern.permute.xlu0 0
  %1296 = vperm.xlu0 %1295, %v1292
  %v1297 = vpop.permute.xlu0 %1296
  %1300 = vset.pattern.permute.xlu0 0
  %1301 = vperm.xlu0 %1300, %v1293
  %v1302 = vpop.permute.xlu0 %1301
  %v1305 = vsel %vm1068, %v1290, 0
  %v1308 = vsel %vm1068, %v1291, 0
  %1310 = vmatpush.msra.mxu0 0.0
  %1311 = vmatpush.msra.mxu0 0.0
  %1312 = vmatpush.msra.mxu0 0.0
  %1313 = vmatpush.msra.mxu0 0.0
  %1314 = vmatpush.msra.mxu0 0.0
  %1315 = vmatpush.msra.mxu0 0.0
  %1316 = vmatpush.msra.mxu0 0.0
  %1317 = vmatpush.msra.mxu0 0.0
  %1318 = vmatpush.msra.mxu0 0.0
  %1319 = vmatpush.msra.mxu0 0.0
  %1320 = vmatpush.msra.mxu0 0.0
  %1321 = vmatpush.msra.mxu0 0.0
  %1322 = vmatpush.msra.mxu0 0.0
  %1323 = vmatpush.msra.mxu0 0.0
  %1324 = vmatpush.msra.mxu0 0.0
  %1325 = vmatpush.msra.mxu0 %v1289
  %1326 = vmatmul.f32.gmra.mxu0 %v1305
  %v1327 = vpop.f32.mrf.mxu0
  %v1328 = vadd.f32 %v1297, %v1327
  %1329 = vmatmul.f32.gmra.mxu0 %v1308
  %v1330 = vpop.f32.mrf.mxu0
  %v1331 = vadd.f32 %v1302, %v1330
  %1332 = vdwg.mxu0
  %1335 = vrot.lane.b32.xlu0 %v1328, 13
  %v1336 = vpop.permute.xlu0 %1335
  %1337 = vrot.lane.b32.xlu0 %v1331, 13
  %v1338 = vpop.permute.xlu0 %1337
  %v1341 = vadd.f32 %v1145, %v1336
  %v1342 = vadd.f32 %v1148, %v1338
  %v1343 = vmax.f32 %v1341, 0.0
  %v1344 = vmax.f32 %v1342, 0.0
  %v1345 = vld [vmem:[%s18] sm:$0xff]
  %v1346 = vld [vmem:[%s18 + $0x8] sm:$0xff]
  %v1347 = vld [vmem:[%s18 + $0x10] sm:$0xff]
  %v1348 = vld [vmem:[%s18 + $0x18] sm:$0xff]
  %v1349 = vld [vmem:[%s18 + $0x20] sm:$0xff]
  %v1350 = vld [vmem:[%s18 + $0x28] sm:$0x3f]
  %1353 = vrot.lane.b32.xlu0 %v1343, 115
  %v1354 = vpop.permute.xlu0 %1353
  %1355 = vrot.lane.b32.xlu0 %v1344, 115
  %v1356 = vpop.permute.xlu0 %1355
  %v1357 = vsel %vm719, %v1354, 0
  %v1359 = vsel %vm719, %v1356, 0
  %v1362 = vsel %vm887, %v1350, 0
  %1364 = vmatpush.msra.mxu0 0.0
  %1365 = vmatpush.msra.mxu0 0.0
  %1366 = vmatpush.msra.mxu0 0.0
  %1367 = vmatpush.msra.mxu0 0.0
  %1368 = vmatpush.msra.mxu0 0.0
  %1369 = vmatpush.msra.mxu0 0.0
  %1370 = vmatpush.msra.mxu0 0.0
  %1371 = vmatpush.msra.mxu0 0.0
  %1372 = vmatpush.msra.mxu0 0.0
  %1373 = vmatpush.msra.mxu0 0.0
  %1374 = vmatpush.msra.mxu0 %v1362
  %1375 = vmatpush.msra.mxu0 %v1349
  %1376 = vmatpush.msra.mxu0 %v1348
  %1377 = vmatpush.msra.mxu0 %v1347
  %1378 = vmatpush.msra.mxu0 %v1346
  %1379 = vmatpush.msra.mxu0 %v1345
  %1380 = vmatmul.f32.gmra.mxu0 %v1357
  %v1381 = vpop.f32.mrf.mxu0
  %v1382 = vadd.f32 0.0, %v1381
  %1383 = vmatmul.f32.gmra.mxu0 %v1359
  %v1384 = vpop.f32.mrf.mxu0
  %v1385 = vadd.f32 0.0, %v1384
  %1386 = vdwg.mxu0
  %1387 = vst [vmem:[%s19] sm:$0xff] %v1382
  %1388 = vst [vmem:[%s19 + $0x8] sm:$0xff] %v1385
  // Predicated region
  $region78: #{encoder_block_forward.1} parent=0 // pred_check
    _
  $region79: #{encoder_block_forward.1} parent=0 // pred_check_branch
    %1390 = sbr.rel (0) target = $region81
  $region80: #{encoder_block_forward.1} parent=0 // pred_region
    _
  $region81: #{encoder_block_forward.1} parent=0 // pred_fallthru
    _
  // Predicated region
  $region82: #{encoder_block_forward.1} parent=0 // pred_check
    _
  $region83: #{encoder_block_forward.1} parent=0 // pred_check_branch
    %1392 = sbr.rel (0) target = $region85
  $region84: #{encoder_block_forward.1} parent=0 // pred_region
    _
  $region85: #{encoder_block_forward.1} parent=0 // pred_fallthru
    _

</llo_original>
